<compile_context>
chip_gen: v6e
topology: v6e:2x2x1
jax: 0.10.0
libtpu: 0.0.40
codegen_flags: <defaults>
</compile_context>

<pallas_src>
import jax
import jax.numpy as jnp
from jax import lax
from jax.experimental import pallas as pl
from jax.experimental.pallas import tpu as pltpu


# ---------------- config (small, deterministic) ----------------
WORD_NUM = 100      # config.word_num
WORD_DIM = 16       # config.word_dim == config.lstm_input
LSTM_HIDDEN = 32    # config.lstm_hidden
LINEAR_HIDDEN = 32  # config.linear_hidden
TARGET_CLASS = 4    # config.target_class
BATCH = 8           # == SEQ so the original Encoder's x.size()[1] quirk is consistent
SEQ = 8
BN_EPS = 1e-5

assert BATCH == SEQ, "Encoder uses x.size()[1] as batch for h0/c0; require B == S"

H2 = 2 * LSTM_HIDDEN          # fused (fwd|bwd) state width = 64
GATES = 8 * LSTM_HIDDEN       # fused gate width = 256
V_PAD = 128                   # per-direction table rows padded to 128 (aligned MXU K)
WCAT_ROWS = 2 * V_PAD + H2    # 320: [table_f | pad | table_b | pad | whh]

# packed MLP-head buffer layout (width = LINEAR_HIDDEN)
HEAD_W1 = 0                   # rows [0, 64):    BN-folded W1        (2H, Lh)
HEAD_B1 = H2                  # row  64:         BN-folded b1        (1, Lh)
HEAD_W2 = 72                  # rows [72, 104):  W2 zero-padded      (Lh, Lh)
HEAD_B2 = 104                 # row  104:        b2 zero-padded      (1, Lh)
HEAD_ROWS = 112


def sentiment_kernel(ids_ref, wcat_ref, head_ref, out_ref, xg_ref):
    """Whole forward pass for one (B, S) batch of token ids.

    ids_ref  : (B, S)            int32  token ids
    wcat_ref : (320, 8H)         f32    [table_f(+bias) | pad | table_b | pad | W_hh]
    head_ref : (112, Lh)         f32    [W1 ; b1 ; pad ; W2(pad) ; b2(pad) ; pad]
    out_ref  : (B, C)            f32    log-probabilities
    xg_ref   : (S*B, 8H) scratch f32    per-step gate pre-activations
    """
    B, S, H = BATCH, SEQ, LSTM_HIDDEN

    ids = ids_ref[...]                                            # (B, S) int32
    iota = lax.broadcasted_iota(jnp.int32, (B, 2 * V_PAD), 1)     # (B, 256)

    # "Two-hot" selection matrix, time-major rows r = t*B + b:
    #   hot at ids[b, t]            -> selects (embed @ W_ih_fwd + all biases)[id]
    #   hot at V_PAD + ids[b,S-1-t] -> selects (embed @ W_ih_bwd)[id]
    rows = []
    for t in range(S):
        hot_f = iota == ids[:, t:t + 1]
        hot_b = iota == (ids[:, S - 1 - t:S - t] + V_PAD)
        rows.append((hot_f | hot_b).astype(jnp.float32))
    sel = jnp.concatenate(rows, axis=0)                           # (S*B, 2*V_PAD)

    # Embedding gather + input projection for ALL steps and BOTH directions in one
    # MXU matmul; stage in VMEM scratch so it is not live across the unrolled loop.
    xg_ref[...] = jnp.dot(sel, wcat_ref[0:2 * V_PAD, :],
                          preferred_element_type=jnp.float32)     # (S*B, 8H)

    whh = wcat_ref[2 * V_PAD:2 * V_PAD + H2, :]                   # (2H, 8H) block-diag

    h = jnp.zeros((B, H2), jnp.float32)   # [h_fwd | h_bwd]
    c = jnp.zeros((B, H2), jnp.float32)   # [c_fwd | c_bwd]

    # Fused bidirectional recurrence, statically unrolled (S is compile-time const).
    # Gate column order: [f_f,f_b, i_f,i_b, o_f,o_b, g_f,g_b].
    for t in range(S):
        gates = xg_ref[t * B:(t + 1) * B, :] + jnp.dot(
            h, whh, preferred_element_type=jnp.float32)           # (B, 8H)
        sig = jax.nn.sigmoid(gates[:, :6 * H])                    # contiguous EUP slab
        g = jnp.tanh(gates[:, 6 * H:])                            # (B, 2H)
        f = sig[:, 0 * H2:1 * H2]                                 # lane offset 0 (== c)
        i = sig[:, 1 * H2:2 * H2]
        o = sig[:, 2 * H2:3 * H2]                                 # lane offset 0 (== c)
        c = f * c + i * g
        h = o * jnp.tanh(c)

    # encoded == concat([h_fwd_final, h_bwd_final], -1) == h (layout already matches).
    # MLP head: BN (eval) folded into W1/b1; Dropout is identity.
    w1 = head_ref[HEAD_W1:HEAD_W1 + H2, :]                        # (2H, Lh)
    b1 = head_ref[HEAD_B1:HEAD_B1 + 1, :]                         # (1, Lh)
    w2 = head_ref[HEAD_W2:HEAD_W2 + LINEAR_HIDDEN, :]             # (Lh, Lh) zero-padded
    b2 = head_ref[HEAD_B2:HEAD_B2 + 1, :]                         # (1, Lh) zero-padded

    z1 = jnp.maximum(jnp.dot(h, w1, preferred_element_type=jnp.float32) + b1, 0.0)
    logits = (jnp.dot(z1, w2, preferred_element_type=jnp.float32) + b2)[:, :TARGET_CLASS]

    # log_softmax over the class axis (dim=1)
    mx = jnp.max(logits, axis=-1, keepdims=True)
    shifted = logits - mx
    lse = jnp.log(jnp.sum(jnp.exp(shifted), axis=-1, keepdims=True))
    out_ref[...] = shifted - lse


def make_params(key):
    """Deterministic parameter init matching the PyTorch module's shapes."""
    ks = jax.random.split(key, 16)
    H, D, Lh, C = LSTM_HIDDEN, WORD_DIM, LINEAR_HIDDEN, TARGET_CLASS
    s = 0.1
    params = dict(
        embed=jax.random.normal(ks[0], (WORD_NUM, D), jnp.float32) * s,
        # LSTM (PyTorch stores W_ih:(4H,D), W_hh:(4H,H); kept transposed here,
        # gate order [i, f, g, o] along the 4H axis as in PyTorch).
        wih_f=jax.random.normal(ks[1], (D, 4 * H), jnp.float32) * s,
        whh_f=jax.random.normal(ks[2], (H, 4 * H), jnp.float32) * s,
        b_f=(jax.random.normal(ks[3], (1, 4 * H), jnp.float32) * s
             + jax.random.normal(ks[4], (1, 4 * H), jnp.float32) * s),  # b_ih + b_hh
        wih_b=jax.random.normal(ks[5], (D, 4 * H), jnp.float32) * s,
        whh_b=jax.random.normal(ks[6], (H, 4 * H), jnp.float32) * s,
        b_b=(jax.random.normal(ks[7], (1, 4 * H), jnp.float32) * s
             + jax.random.normal(ks[8], (1, 4 * H), jnp.float32) * s),
        # MLP head
        w1=jax.random.normal(ks[9], (2 * H, Lh), jnp.float32) * s,
        b1=jax.random.normal(ks[10], (1, Lh), jnp.float32) * s,
        gamma=jnp.ones((1, Lh), jnp.float32),
        beta=jnp.zeros((1, Lh), jnp.float32),
        run_mean=jnp.zeros((1, Lh), jnp.float32),
        run_var=jnp.ones((1, Lh), jnp.float32),
        w2=jax.random.normal(ks[11], (Lh, C), jnp.float32) * s,
        b2=jax.random.normal(ks[12], (1, C), jnp.float32) * s,
    )
    return params


def _split_ifgo(w):
    """Split a (..., 4H) PyTorch-ordered [i, f, g, o] tensor into its 4 gate blocks."""
    H = LSTM_HIDDEN
    return w[..., 0:H], w[..., H:2 * H], w[..., 2 * H:3 * H], w[..., 3 * H:4 * H]


def pack_model(params):
    """One-time (model-load) packing.  Runs eagerly, OUTSIDE the per-call path.

    Builds:
      wcat (320, 8H): [embed@W_ih_fwd + biases | pad | embed@W_ih_bwd | pad | W_hh]
                      gate column order [f_f,f_b, i_f,i_b, o_f,o_b, g_f,g_b]
      head (112, Lh): [BN-folded W1 ; b1 ; pad ; zero-padded W2 ; zero-padded b2 ; pad]
    """
    H, D, V, Lh, C = LSTM_HIDDEN, WORD_DIM, WORD_NUM, LINEAR_HIDDEN, TARGET_CLASS
    hp = jax.lax.Precision.HIGHEST

    i_f, f_f, g_f, o_f = _split_ifgo(params["wih_f"])        # each (D, H)
    i_b, f_b, g_b, o_b = _split_ifgo(params["wih_b"])
    zD = jnp.zeros((D, H), jnp.float32)
    wih_fwd = jnp.concatenate([f_f, zD, i_f, zD, o_f, zD, g_f, zD], axis=1)   # (D, 8H)
    wih_bwd = jnp.concatenate([zD, f_b, zD, i_b, zD, o_b, zD, g_b], axis=1)   # (D, 8H)

    bi_f, bf_f, bg_f, bo_f = _split_ifgo(params["b_f"])       # each (1, H)
    bi_b, bf_b, bg_b, bo_b = _split_ifgo(params["b_b"])
    bias = jnp.concatenate(
        [bf_f, bf_b, bi_f, bi_b, bo_f, bo_b, bg_f, bg_b], axis=1)            # (1, 8H)

    # Fold the embedding into the input projection; fold the full bias into the
    # forward table (each two-hot row selects exactly one fwd and one bwd row).
    table_f = jnp.dot(params["embed"], wih_fwd, precision=hp) + bias          # (V, 8H)
    table_b = jnp.dot(params["embed"], wih_bwd, precision=hp)                 # (V, 8H)
    zpad = jnp.zeros((V_PAD - V, 8 * H), jnp.float32)

    ih_f, fh_f, gh_f, oh_f = _split_ifgo(params["whh_f"])      # each (H, H)
    ih_b, fh_b, gh_b, oh_b = _split_ifgo(params["whh_b"])
    zH = jnp.zeros((H, H), jnp.float32)
    whh_fwd = jnp.concatenate([fh_f, zH, ih_f, zH, oh_f, zH, gh_f, zH], axis=1)
    whh_bwd = jnp.concatenate([zH, fh_b, zH, ih_b, zH, oh_b, zH, gh_b], axis=1)
    whh = jnp.concatenate([whh_fwd, whh_bwd], axis=0)                         # (2H, 8H)

    wcat = jnp.concatenate([table_f, zpad, table_b, zpad, whh], axis=0)       # (320, 8H)

    # Eval-mode BatchNorm1d folded into Linear1.
    scale = params["gamma"] * jax.lax.rsqrt(params["run_var"] + BN_EPS)       # (1, Lh)
    w1_eff = params["w1"] * scale                                             # (2H, Lh)
    b1_eff = (params["b1"] - params["run_mean"]) * scale + params["beta"]     # (1, Lh)

    head = jnp.zeros((HEAD_ROWS, Lh), jnp.float32)
    head = head.at[HEAD_W1:HEAD_W1 + 2 * H, :].set(w1_eff)
    head = head.at[HEAD_B1, :].set(b1_eff[0])
    head = head.at[HEAD_W2:HEAD_W2 + Lh, 0:C].set(params["w2"])
    head = head.at[HEAD_B2, 0:C].set(params["b2"][0])
    return wcat, head


@jax.jit
def sentiment_forward(token_ids, wcat, head):
    """Per-call path: nothing but one pallas_call (no XLA glue ops)."""
    vmem = pl.BlockSpec(memory_space=pltpu.MemorySpace.VMEM)
    return pl.pallas_call(
        sentiment_kernel,
        out_shape=jax.ShapeDtypeStruct((BATCH, TARGET_CLASS), jnp.float32),
        in_specs=[vmem, vmem, vmem],
        out_specs=vmem,
        scratch_shapes=[pltpu.VMEM((SEQ * BATCH, GATES), jnp.float32)],
    )(token_ids, wcat, head)


def reference_forward(token_ids, params):
    """Pure-JAX reference of the same forward pass (PyTorch gate order), for checking."""
    emb = jnp.take(params["embed"], token_ids, axis=0)
    H = LSTM_HIDDEN

    def step(x_t, h, c, wih, whh, b):
        g = x_t @ wih + h @ whh + b
        i = jax.nn.sigmoid(g[:, :H])
        f = jax.nn.sigmoid(g[:, H:2 * H])
        gg = jnp.tanh(g[:, 2 * H:3 * H])
        o = jax.nn.sigmoid(g[:, 3 * H:])
        c = f * c + i * gg
        return o * jnp.tanh(c), c

    h = jnp.zeros((BATCH, H)); c = jnp.zeros((BATCH, H))
    for t in range(SEQ):
        h, c = step(emb[:, t, :], h, c, params["wih_f"], params["whh_f"], params["b_f"])
    h_fwd = h
    h = jnp.zeros((BATCH, H)); c = jnp.zeros((BATCH, H))
    for t in range(SEQ - 1, -1, -1):
        h, c = step(emb[:, t, :], h, c, params["wih_b"], params["whh_b"], params["b_b"])
    h_bwd = h
    enc = jnp.concatenate([h_fwd, h_bwd], axis=-1)
    z1 = enc @ params["w1"] + params["b1"]
    z1 = (z1 - params["run_mean"]) / jnp.sqrt(params["run_var"] + BN_EPS) * params["gamma"] + params["beta"]
    z1 = jnp.maximum(z1, 0.0)
    logits = z1 @ params["w2"] + params["b2"]
    return jax.nn.log_softmax(logits, axis=1)


if __name__ == "__main__":
    key = jax.random.PRNGKey(0)
    k_ids, k_params = jax.random.split(key)
    token_ids = jax.random.randint(k_ids, (BATCH, SEQ), 0, WORD_NUM, dtype=jnp.int32)
    params = make_params(k_params)

    # One-time model-load packing (outside the per-call path).
    wcat, head = pack_model(params)
    wcat, head = jax.block_until_ready((wcat, head))

    scores = sentiment_forward(token_ids, wcat, head)
    scores = jax.block_until_ready(scores)

    ref = reference_forward(token_ids, params)
    assert scores.shape == (BATCH, TARGET_CLASS)
    assert jnp.allclose(scores, ref, atol=2e-4, rtol=2e-4), "mismatch vs reference"

    print("KERNEL_OK")
</pallas_src>

<mosaic_0001>
module attributes {stable_mosaic.version = 11 : i64} {
  func.func @sentiment_kernel(%arg0: memref<8x8xi32, #tpu.memory_space<vmem>>, %arg1: memref<320x256xf32, #tpu.memory_space<vmem>>, %arg2: memref<112x32xf32, #tpu.memory_space<vmem>>, %arg3: memref<8x4xf32, #tpu.memory_space<vmem>>, %arg4: memref<64x256xf32, #tpu.memory_space<vmem>>) attributes {dimension_semantics = [], scalar_prefetch = 0 : i64, scratch_operands = 1 : i64, tpu.core_type = #tpu.core_type<tc>} {
    %c0 = arith.constant 0 : index
    %c0_0 = arith.constant 0 : index
    %0 = vector.load %arg0[%c0, %c0_0] : memref<8x8xi32, #tpu.memory_space<vmem>>, vector<8x8xi32>
    %1 = tpu.iota {dimensions = array<i32: 1>} : vector<8x256xi32>
    %2 = vector.extract_strided_slice %0 {offsets = [0, 0], sizes = [8, 1], strides = [1, 1]} : vector<8x8xi32> to vector<8x1xi32>
    %3 = vector.broadcast %2 : vector<8x1xi32> to vector<8x256xi32>
    %4 = arith.cmpi eq, %1, %3 : vector<8x256xi32>
    %5 = vector.extract_strided_slice %0 {offsets = [0, 7], sizes = [8, 1], strides = [1, 1]} : vector<8x8xi32> to vector<8x1xi32>
    %c128_i32 = arith.constant 128 : i32
    %6 = vector.broadcast %c128_i32 : i32 to vector<8x1xi32>
    %7 = arith.addi %5, %6 : vector<8x1xi32>
    %8 = vector.broadcast %7 : vector<8x1xi32> to vector<8x256xi32>
    %9 = arith.cmpi eq, %1, %8 : vector<8x256xi32>
    %10 = arith.ori %4, %9 : vector<8x256xi1>
    %11 = arith.extui %10 : vector<8x256xi1> to vector<8x256xi32>
    %12 = arith.sitofp %11 : vector<8x256xi32> to vector<8x256xf32>
    %13 = vector.extract_strided_slice %0 {offsets = [0, 1], sizes = [8, 1], strides = [1, 1]} : vector<8x8xi32> to vector<8x1xi32>
    %14 = vector.broadcast %13 : vector<8x1xi32> to vector<8x256xi32>
    %15 = arith.cmpi eq, %1, %14 : vector<8x256xi32>
    %16 = vector.extract_strided_slice %0 {offsets = [0, 6], sizes = [8, 1], strides = [1, 1]} : vector<8x8xi32> to vector<8x1xi32>
    %c128_i32_1 = arith.constant 128 : i32
    %17 = vector.broadcast %c128_i32_1 : i32 to vector<8x1xi32>
    %18 = arith.addi %16, %17 : vector<8x1xi32>
    %19 = vector.broadcast %18 : vector<8x1xi32> to vector<8x256xi32>
    %20 = arith.cmpi eq, %1, %19 : vector<8x256xi32>
    %21 = arith.ori %15, %20 : vector<8x256xi1>
    %22 = arith.extui %21 : vector<8x256xi1> to vector<8x256xi32>
    %23 = arith.sitofp %22 : vector<8x256xi32> to vector<8x256xf32>
    %24 = vector.extract_strided_slice %0 {offsets = [0, 2], sizes = [8, 1], strides = [1, 1]} : vector<8x8xi32> to vector<8x1xi32>
    %25 = vector.broadcast %24 : vector<8x1xi32> to vector<8x256xi32>
    %26 = arith.cmpi eq, %1, %25 : vector<8x256xi32>
    %27 = vector.extract_strided_slice %0 {offsets = [0, 5], sizes = [8, 1], strides = [1, 1]} : vector<8x8xi32> to vector<8x1xi32>
    %c128_i32_2 = arith.constant 128 : i32
    %28 = vector.broadcast %c128_i32_2 : i32 to vector<8x1xi32>
    %29 = arith.addi %27, %28 : vector<8x1xi32>
    %30 = vector.broadcast %29 : vector<8x1xi32> to vector<8x256xi32>
    %31 = arith.cmpi eq, %1, %30 : vector<8x256xi32>
    %32 = arith.ori %26, %31 : vector<8x256xi1>
    %33 = arith.extui %32 : vector<8x256xi1> to vector<8x256xi32>
    %34 = arith.sitofp %33 : vector<8x256xi32> to vector<8x256xf32>
    %35 = vector.extract_strided_slice %0 {offsets = [0, 3], sizes = [8, 1], strides = [1, 1]} : vector<8x8xi32> to vector<8x1xi32>
    %36 = vector.broadcast %35 : vector<8x1xi32> to vector<8x256xi32>
    %37 = arith.cmpi eq, %1, %36 : vector<8x256xi32>
    %38 = vector.extract_strided_slice %0 {offsets = [0, 4], sizes = [8, 1], strides = [1, 1]} : vector<8x8xi32> to vector<8x1xi32>
    %c128_i32_3 = arith.constant 128 : i32
    %39 = vector.broadcast %c128_i32_3 : i32 to vector<8x1xi32>
    %40 = arith.addi %38, %39 : vector<8x1xi32>
    %41 = vector.broadcast %40 : vector<8x1xi32> to vector<8x256xi32>
    %42 = arith.cmpi eq, %1, %41 : vector<8x256xi32>
    %43 = arith.ori %37, %42 : vector<8x256xi1>
    %44 = arith.extui %43 : vector<8x256xi1> to vector<8x256xi32>
    %45 = arith.sitofp %44 : vector<8x256xi32> to vector<8x256xf32>
    %46 = vector.extract_strided_slice %0 {offsets = [0, 4], sizes = [8, 1], strides = [1, 1]} : vector<8x8xi32> to vector<8x1xi32>
    %47 = vector.broadcast %46 : vector<8x1xi32> to vector<8x256xi32>
    %48 = arith.cmpi eq, %1, %47 : vector<8x256xi32>
    %49 = vector.extract_strided_slice %0 {offsets = [0, 3], sizes = [8, 1], strides = [1, 1]} : vector<8x8xi32> to vector<8x1xi32>
    %c128_i32_4 = arith.constant 128 : i32
    %50 = vector.broadcast %c128_i32_4 : i32 to vector<8x1xi32>
    %51 = arith.addi %49, %50 : vector<8x1xi32>
    %52 = vector.broadcast %51 : vector<8x1xi32> to vector<8x256xi32>
    %53 = arith.cmpi eq, %1, %52 : vector<8x256xi32>
    %54 = arith.ori %48, %53 : vector<8x256xi1>
    %55 = arith.extui %54 : vector<8x256xi1> to vector<8x256xi32>
    %56 = arith.sitofp %55 : vector<8x256xi32> to vector<8x256xf32>
    %57 = vector.extract_strided_slice %0 {offsets = [0, 5], sizes = [8, 1], strides = [1, 1]} : vector<8x8xi32> to vector<8x1xi32>
    %58 = vector.broadcast %57 : vector<8x1xi32> to vector<8x256xi32>
    %59 = arith.cmpi eq, %1, %58 : vector<8x256xi32>
    %60 = vector.extract_strided_slice %0 {offsets = [0, 2], sizes = [8, 1], strides = [1, 1]} : vector<8x8xi32> to vector<8x1xi32>
    %c128_i32_5 = arith.constant 128 : i32
    %61 = vector.broadcast %c128_i32_5 : i32 to vector<8x1xi32>
    %62 = arith.addi %60, %61 : vector<8x1xi32>
    %63 = vector.broadcast %62 : vector<8x1xi32> to vector<8x256xi32>
    %64 = arith.cmpi eq, %1, %63 : vector<8x256xi32>
    %65 = arith.ori %59, %64 : vector<8x256xi1>
    %66 = arith.extui %65 : vector<8x256xi1> to vector<8x256xi32>
    %67 = arith.sitofp %66 : vector<8x256xi32> to vector<8x256xf32>
    %68 = vector.extract_strided_slice %0 {offsets = [0, 6], sizes = [8, 1], strides = [1, 1]} : vector<8x8xi32> to vector<8x1xi32>
    %69 = vector.broadcast %68 : vector<8x1xi32> to vector<8x256xi32>
    %70 = arith.cmpi eq, %1, %69 : vector<8x256xi32>
    %71 = vector.extract_strided_slice %0 {offsets = [0, 1], sizes = [8, 1], strides = [1, 1]} : vector<8x8xi32> to vector<8x1xi32>
    %c128_i32_6 = arith.constant 128 : i32
    %72 = vector.broadcast %c128_i32_6 : i32 to vector<8x1xi32>
    %73 = arith.addi %71, %72 : vector<8x1xi32>
    %74 = vector.broadcast %73 : vector<8x1xi32> to vector<8x256xi32>
    %75 = arith.cmpi eq, %1, %74 : vector<8x256xi32>
    %76 = arith.ori %70, %75 : vector<8x256xi1>
    %77 = arith.extui %76 : vector<8x256xi1> to vector<8x256xi32>
    %78 = arith.sitofp %77 : vector<8x256xi32> to vector<8x256xf32>
    %79 = vector.extract_strided_slice %0 {offsets = [0, 7], sizes = [8, 1], strides = [1, 1]} : vector<8x8xi32> to vector<8x1xi32>
    %80 = vector.broadcast %79 : vector<8x1xi32> to vector<8x256xi32>
    %81 = arith.cmpi eq, %1, %80 : vector<8x256xi32>
    %82 = vector.extract_strided_slice %0 {offsets = [0, 0], sizes = [8, 1], strides = [1, 1]} : vector<8x8xi32> to vector<8x1xi32>
    %c128_i32_7 = arith.constant 128 : i32
    %83 = vector.broadcast %c128_i32_7 : i32 to vector<8x1xi32>
    %84 = arith.addi %82, %83 : vector<8x1xi32>
    %85 = vector.broadcast %84 : vector<8x1xi32> to vector<8x256xi32>
    %86 = arith.cmpi eq, %1, %85 : vector<8x256xi32>
    %87 = arith.ori %81, %86 : vector<8x256xi1>
    %88 = arith.extui %87 : vector<8x256xi1> to vector<8x256xi32>
    %89 = arith.sitofp %88 : vector<8x256xi32> to vector<8x256xf32>
    %90 = tpu.concatenate %12, %23, %34, %45, %56, %67, %78, %89 in 0 : vector<8x256xf32>, vector<8x256xf32>, vector<8x256xf32>, vector<8x256xf32>, vector<8x256xf32>, vector<8x256xf32>, vector<8x256xf32>, vector<8x256xf32> -> vector<64x256xf32>
    %c0_8 = arith.constant 0 : index
    %c0_9 = arith.constant 0 : index
    %91 = vector.load %arg1[%c0_8, %c0_9] : memref<320x256xf32, #tpu.memory_space<vmem>>, vector<256x256xf32>
    %cst = arith.constant dense<0.000000e+00> : vector<64x256xf32>
    %92 = tpu.matmul %90, %91, %cst {dimension_numbers = #tpu.dot_dimension_numbers<[1], [0], [0], [1], [0, 0, 1, 1], [], []>} : vector<64x256xf32>, vector<256x256xf32>, vector<64x256xf32> -> vector<64x256xf32>
    %c0_10 = arith.constant 0 : index
    %c0_11 = arith.constant 0 : index
    %93 = vector.load %arg4[%c0_10, %c0_11] : memref<64x256xf32, #tpu.memory_space<vmem>>, vector<64x256xf32>
    tpu.vector_store %arg4[%c0_10, %c0_11], %92 {strides = array<i32>} : memref<64x256xf32, #tpu.memory_space<vmem>>, vector<64x256xf32>,
    %c256 = arith.constant 256 : index
    %c0_12 = arith.constant 0 : index
    %94 = vector.load %arg1[%c256, %c0_12] : memref<320x256xf32, #tpu.memory_space<vmem>>, vector<64x256xf32>
    %cst_13 = arith.constant 0.000000e+00 : f32
    %95 = vector.broadcast %cst_13 : f32 to vector<8x64xf32>
    %cst_14 = arith.constant 0.000000e+00 : f32
    %96 = vector.broadcast %cst_14 : f32 to vector<8x64xf32>
    %c0_15 = arith.constant 0 : index
    %c0_16 = arith.constant 0 : index
    %97 = vector.load %arg4[%c0_15, %c0_16] : memref<64x256xf32, #tpu.memory_space<vmem>>, vector<8x256xf32>
    %cst_17 = arith.constant dense<0.000000e+00> : vector<8x256xf32>
    %98 = tpu.matmul %95, %94, %cst_17 {dimension_numbers = #tpu.dot_dimension_numbers<[1], [0], [0], [1], [0, 0, 1, 1], [], []>} : vector<8x64xf32>, vector<64x256xf32>, vector<8x256xf32> -> vector<8x256xf32>
    %99 = arith.addf %97, %98 : vector<8x256xf32>
    %100 = vector.extract_strided_slice %99 {offsets = [0, 0], sizes = [8, 192], strides = [1, 1]} : vector<8x256xf32> to vector<8x192xf32>
    %101 = arith.negf %100 : vector<8x192xf32>
    %102 = math.exp %101 : vector<8x192xf32>
    %cst_18 = arith.constant 1.000000e+00 : f32
    %103 = vector.broadcast %cst_18 : f32 to vector<8x192xf32>
    %104 = arith.addf %103, %102 : vector<8x192xf32>
    %105 = arith.divf %103, %104 : vector<8x192xf32>
    %106 = vector.extract_strided_slice %99 {offsets = [0, 192], sizes = [8, 64], strides = [1, 1]} : vector<8x256xf32> to vector<8x64xf32>
    %107 = math.tanh %106 : vector<8x64xf32>
    %108 = vector.extract_strided_slice %105 {offsets = [0, 0], sizes = [8, 64], strides = [1, 1]} : vector<8x192xf32> to vector<8x64xf32>
    %109 = vector.extract_strided_slice %105 {offsets = [0, 64], sizes = [8, 64], strides = [1, 1]} : vector<8x192xf32> to vector<8x64xf32>
    %110 = vector.extract_strided_slice %105 {offsets = [0, 128], sizes = [8, 64], strides = [1, 1]} : vector<8x192xf32> to vector<8x64xf32>
    %111 = arith.mulf %108, %96 : vector<8x64xf32>
    %112 = arith.mulf %109, %107 : vector<8x64xf32>
    %113 = arith.addf %111, %112 : vector<8x64xf32>
    %114 = math.tanh %113 : vector<8x64xf32>
    %115 = arith.mulf %110, %114 : vector<8x64xf32>
    %c8 = arith.constant 8 : index
    %c0_19 = arith.constant 0 : index
    %116 = vector.load %arg4[%c8, %c0_19] : memref<64x256xf32, #tpu.memory_space<vmem>>, vector<8x256xf32>
    %cst_20 = arith.constant dense<0.000000e+00> : vector<8x256xf32>
    %117 = tpu.matmul %115, %94, %cst_20 {dimension_numbers = #tpu.dot_dimension_numbers<[1], [0], [0], [1], [0, 0, 1, 1], [], []>} : vector<8x64xf32>, vector<64x256xf32>, vector<8x256xf32> -> vector<8x256xf32>
    %118 = arith.addf %116, %117 : vector<8x256xf32>
    %119 = vector.extract_strided_slice %118 {offsets = [0, 0], sizes = [8, 192], strides = [1, 1]} : vector<8x256xf32> to vector<8x192xf32>
    %120 = arith.negf %119 : vector<8x192xf32>
    %121 = math.exp %120 : vector<8x192xf32>
    %cst_21 = arith.constant 1.000000e+00 : f32
    %122 = vector.broadcast %cst_21 : f32 to vector<8x192xf32>
    %123 = arith.addf %122, %121 : vector<8x192xf32>
    %124 = arith.divf %122, %123 : vector<8x192xf32>
    %125 = vector.extract_strided_slice %118 {offsets = [0, 192], sizes = [8, 64], strides = [1, 1]} : vector<8x256xf32> to vector<8x64xf32>
    %126 = math.tanh %125 : vector<8x64xf32>
    %127 = vector.extract_strided_slice %124 {offsets = [0, 0], sizes = [8, 64], strides = [1, 1]} : vector<8x192xf32> to vector<8x64xf32>
    %128 = vector.extract_strided_slice %124 {offsets = [0, 64], sizes = [8, 64], strides = [1, 1]} : vector<8x192xf32> to vector<8x64xf32>
    %129 = vector.extract_strided_slice %124 {offsets = [0, 128], sizes = [8, 64], strides = [1, 1]} : vector<8x192xf32> to vector<8x64xf32>
    %130 = arith.mulf %127, %113 : vector<8x64xf32>
    %131 = arith.mulf %128, %126 : vector<8x64xf32>
    %132 = arith.addf %130, %131 : vector<8x64xf32>
    %133 = math.tanh %132 : vector<8x64xf32>
    %134 = arith.mulf %129, %133 : vector<8x64xf32>
    %c16 = arith.constant 16 : index
    %c0_22 = arith.constant 0 : index
    %135 = vector.load %arg4[%c16, %c0_22] : memref<64x256xf32, #tpu.memory_space<vmem>>, vector<8x256xf32>
    %cst_23 = arith.constant dense<0.000000e+00> : vector<8x256xf32>
    %136 = tpu.matmul %134, %94, %cst_23 {dimension_numbers = #tpu.dot_dimension_numbers<[1], [0], [0], [1], [0, 0, 1, 1], [], []>} : vector<8x64xf32>, vector<64x256xf32>, vector<8x256xf32> -> vector<8x256xf32>
    %137 = arith.addf %135, %136 : vector<8x256xf32>
    %138 = vector.extract_strided_slice %137 {offsets = [0, 0], sizes = [8, 192], strides = [1, 1]} : vector<8x256xf32> to vector<8x192xf32>
    %139 = arith.negf %138 : vector<8x192xf32>
    %140 = math.exp %139 : vector<8x192xf32>
    %cst_24 = arith.constant 1.000000e+00 : f32
    %141 = vector.broadcast %cst_24 : f32 to vector<8x192xf32>
    %142 = arith.addf %141, %140 : vector<8x192xf32>
    %143 = arith.divf %141, %142 : vector<8x192xf32>
    %144 = vector.extract_strided_slice %137 {offsets = [0, 192], sizes = [8, 64], strides = [1, 1]} : vector<8x256xf32> to vector<8x64xf32>
    %145 = math.tanh %144 : vector<8x64xf32>
    %146 = vector.extract_strided_slice %143 {offsets = [0, 0], sizes = [8, 64], strides = [1, 1]} : vector<8x192xf32> to vector<8x64xf32>
    %147 = vector.extract_strided_slice %143 {offsets = [0, 64], sizes = [8, 64], strides = [1, 1]} : vector<8x192xf32> to vector<8x64xf32>
    %148 = vector.extract_strided_slice %143 {offsets = [0, 128], sizes = [8, 64], strides = [1, 1]} : vector<8x192xf32> to vector<8x64xf32>
    %149 = arith.mulf %146, %132 : vector<8x64xf32>
    %150 = arith.mulf %147, %145 : vector<8x64xf32>
    %151 = arith.addf %149, %150 : vector<8x64xf32>
    %152 = math.tanh %151 : vector<8x64xf32>
    %153 = arith.mulf %148, %152 : vector<8x64xf32>
    %c24 = arith.constant 24 : index
    %c0_25 = arith.constant 0 : index
    %154 = vector.load %arg4[%c24, %c0_25] : memref<64x256xf32, #tpu.memory_space<vmem>>, vector<8x256xf32>
    %cst_26 = arith.constant dense<0.000000e+00> : vector<8x256xf32>
    %155 = tpu.matmul %153, %94, %cst_26 {dimension_numbers = #tpu.dot_dimension_numbers<[1], [0], [0], [1], [0, 0, 1, 1], [], []>} : vector<8x64xf32>, vector<64x256xf32>, vector<8x256xf32> -> vector<8x256xf32>
    %156 = arith.addf %154, %155 : vector<8x256xf32>
    %157 = vector.extract_strided_slice %156 {offsets = [0, 0], sizes = [8, 192], strides = [1, 1]} : vector<8x256xf32> to vector<8x192xf32>
    %158 = arith.negf %157 : vector<8x192xf32>
    %159 = math.exp %158 : vector<8x192xf32>
    %cst_27 = arith.constant 1.000000e+00 : f32
    %160 = vector.broadcast %cst_27 : f32 to vector<8x192xf32>
    %161 = arith.addf %160, %159 : vector<8x192xf32>
    %162 = arith.divf %160, %161 : vector<8x192xf32>
    %163 = vector.extract_strided_slice %156 {offsets = [0, 192], sizes = [8, 64], strides = [1, 1]} : vector<8x256xf32> to vector<8x64xf32>
    %164 = math.tanh %163 : vector<8x64xf32>
    %165 = vector.extract_strided_slice %162 {offsets = [0, 0], sizes = [8, 64], strides = [1, 1]} : vector<8x192xf32> to vector<8x64xf32>
    %166 = vector.extract_strided_slice %162 {offsets = [0, 64], sizes = [8, 64], strides = [1, 1]} : vector<8x192xf32> to vector<8x64xf32>
    %167 = vector.extract_strided_slice %162 {offsets = [0, 128], sizes = [8, 64], strides = [1, 1]} : vector<8x192xf32> to vector<8x64xf32>
    %168 = arith.mulf %165, %151 : vector<8x64xf32>
    %169 = arith.mulf %166, %164 : vector<8x64xf32>
    %170 = arith.addf %168, %169 : vector<8x64xf32>
    %171 = math.tanh %170 : vector<8x64xf32>
    %172 = arith.mulf %167, %171 : vector<8x64xf32>
    %c32 = arith.constant 32 : index
    %c0_28 = arith.constant 0 : index
    %173 = vector.load %arg4[%c32, %c0_28] : memref<64x256xf32, #tpu.memory_space<vmem>>, vector<8x256xf32>
    %cst_29 = arith.constant dense<0.000000e+00> : vector<8x256xf32>
    %174 = tpu.matmul %172, %94, %cst_29 {dimension_numbers = #tpu.dot_dimension_numbers<[1], [0], [0], [1], [0, 0, 1, 1], [], []>} : vector<8x64xf32>, vector<64x256xf32>, vector<8x256xf32> -> vector<8x256xf32>
    %175 = arith.addf %173, %174 : vector<8x256xf32>
    %176 = vector.extract_strided_slice %175 {offsets = [0, 0], sizes = [8, 192], strides = [1, 1]} : vector<8x256xf32> to vector<8x192xf32>
    %177 = arith.negf %176 : vector<8x192xf32>
    %178 = math.exp %177 : vector<8x192xf32>
    %cst_30 = arith.constant 1.000000e+00 : f32
    %179 = vector.broadcast %cst_30 : f32 to vector<8x192xf32>
    %180 = arith.addf %179, %178 : vector<8x192xf32>
    %181 = arith.divf %179, %180 : vector<8x192xf32>
    %182 = vector.extract_strided_slice %175 {offsets = [0, 192], sizes = [8, 64], strides = [1, 1]} : vector<8x256xf32> to vector<8x64xf32>
    %183 = math.tanh %182 : vector<8x64xf32>
    %184 = vector.extract_strided_slice %181 {offsets = [0, 0], sizes = [8, 64], strides = [1, 1]} : vector<8x192xf32> to vector<8x64xf32>
    %185 = vector.extract_strided_slice %181 {offsets = [0, 64], sizes = [8, 64], strides = [1, 1]} : vector<8x192xf32> to vector<8x64xf32>
    %186 = vector.extract_strided_slice %181 {offsets = [0, 128], sizes = [8, 64], strides = [1, 1]} : vector<8x192xf32> to vector<8x64xf32>
    %187 = arith.mulf %184, %170 : vector<8x64xf32>
    %188 = arith.mulf %185, %183 : vector<8x64xf32>
    %189 = arith.addf %187, %188 : vector<8x64xf32>
    %190 = math.tanh %189 : vector<8x64xf32>
    %191 = arith.mulf %186, %190 : vector<8x64xf32>
    %c40 = arith.constant 40 : index
    %c0_31 = arith.constant 0 : index
    %192 = vector.load %arg4[%c40, %c0_31] : memref<64x256xf32, #tpu.memory_space<vmem>>, vector<8x256xf32>
    %cst_32 = arith.constant dense<0.000000e+00> : vector<8x256xf32>
    %193 = tpu.matmul %191, %94, %cst_32 {dimension_numbers = #tpu.dot_dimension_numbers<[1], [0], [0], [1], [0, 0, 1, 1], [], []>} : vector<8x64xf32>, vector<64x256xf32>, vector<8x256xf32> -> vector<8x256xf32>
    %194 = arith.addf %192, %193 : vector<8x256xf32>
    %195 = vector.extract_strided_slice %194 {offsets = [0, 0], sizes = [8, 192], strides = [1, 1]} : vector<8x256xf32> to vector<8x192xf32>
    %196 = arith.negf %195 : vector<8x192xf32>
    %197 = math.exp %196 : vector<8x192xf32>
    %cst_33 = arith.constant 1.000000e+00 : f32
    %198 = vector.broadcast %cst_33 : f32 to vector<8x192xf32>
    %199 = arith.addf %198, %197 : vector<8x192xf32>
    %200 = arith.divf %198, %199 : vector<8x192xf32>
    %201 = vector.extract_strided_slice %194 {offsets = [0, 192], sizes = [8, 64], strides = [1, 1]} : vector<8x256xf32> to vector<8x64xf32>
    %202 = math.tanh %201 : vector<8x64xf32>
    %203 = vector.extract_strided_slice %200 {offsets = [0, 0], sizes = [8, 64], strides = [1, 1]} : vector<8x192xf32> to vector<8x64xf32>
    %204 = vector.extract_strided_slice %200 {offsets = [0, 64], sizes = [8, 64], strides = [1, 1]} : vector<8x192xf32> to vector<8x64xf32>
    %205 = vector.extract_strided_slice %200 {offsets = [0, 128], sizes = [8, 64], strides = [1, 1]} : vector<8x192xf32> to vector<8x64xf32>
    %206 = arith.mulf %203, %189 : vector<8x64xf32>
    %207 = arith.mulf %204, %202 : vector<8x64xf32>
    %208 = arith.addf %206, %207 : vector<8x64xf32>
    %209 = math.tanh %208 : vector<8x64xf32>
    %210 = arith.mulf %205, %209 : vector<8x64xf32>
    %c48 = arith.constant 48 : index
    %c0_34 = arith.constant 0 : index
    %211 = vector.load %arg4[%c48, %c0_34] : memref<64x256xf32, #tpu.memory_space<vmem>>, vector<8x256xf32>
    %cst_35 = arith.constant dense<0.000000e+00> : vector<8x256xf32>
    %212 = tpu.matmul %210, %94, %cst_35 {dimension_numbers = #tpu.dot_dimension_numbers<[1], [0], [0], [1], [0, 0, 1, 1], [], []>} : vector<8x64xf32>, vector<64x256xf32>, vector<8x256xf32> -> vector<8x256xf32>
    %213 = arith.addf %211, %212 : vector<8x256xf32>
    %214 = vector.extract_strided_slice %213 {offsets = [0, 0], sizes = [8, 192], strides = [1, 1]} : vector<8x256xf32> to vector<8x192xf32>
    %215 = arith.negf %214 : vector<8x192xf32>
    %216 = math.exp %215 : vector<8x192xf32>
    %cst_36 = arith.constant 1.000000e+00 : f32
    %217 = vector.broadcast %cst_36 : f32 to vector<8x192xf32>
    %218 = arith.addf %217, %216 : vector<8x192xf32>
    %219 = arith.divf %217, %218 : vector<8x192xf32>
    %220 = vector.extract_strided_slice %213 {offsets = [0, 192], sizes = [8, 64], strides = [1, 1]} : vector<8x256xf32> to vector<8x64xf32>
    %221 = math.tanh %220 : vector<8x64xf32>
    %222 = vector.extract_strided_slice %219 {offsets = [0, 0], sizes = [8, 64], strides = [1, 1]} : vector<8x192xf32> to vector<8x64xf32>
    %223 = vector.extract_strided_slice %219 {offsets = [0, 64], sizes = [8, 64], strides = [1, 1]} : vector<8x192xf32> to vector<8x64xf32>
    %224 = vector.extract_strided_slice %219 {offsets = [0, 128], sizes = [8, 64], strides = [1, 1]} : vector<8x192xf32> to vector<8x64xf32>
    %225 = arith.mulf %222, %208 : vector<8x64xf32>
    %226 = arith.mulf %223, %221 : vector<8x64xf32>
    %227 = arith.addf %225, %226 : vector<8x64xf32>
    %228 = math.tanh %227 : vector<8x64xf32>
    %229 = arith.mulf %224, %228 : vector<8x64xf32>
    %c56 = arith.constant 56 : index
    %c0_37 = arith.constant 0 : index
    %230 = vector.load %arg4[%c56, %c0_37] : memref<64x256xf32, #tpu.memory_space<vmem>>, vector<8x256xf32>
    %cst_38 = arith.constant dense<0.000000e+00> : vector<8x256xf32>
    %231 = tpu.matmul %229, %94, %cst_38 {dimension_numbers = #tpu.dot_dimension_numbers<[1], [0], [0], [1], [0, 0, 1, 1], [], []>} : vector<8x64xf32>, vector<64x256xf32>, vector<8x256xf32> -> vector<8x256xf32>
    %232 = arith.addf %230, %231 : vector<8x256xf32>
    %233 = vector.extract_strided_slice %232 {offsets = [0, 0], sizes = [8, 192], strides = [1, 1]} : vector<8x256xf32> to vector<8x192xf32>
    %234 = arith.negf %233 : vector<8x192xf32>
    %235 = math.exp %234 : vector<8x192xf32>
    %cst_39 = arith.constant 1.000000e+00 : f32
    %236 = vector.broadcast %cst_39 : f32 to vector<8x192xf32>
    %237 = arith.addf %236, %235 : vector<8x192xf32>
    %238 = arith.divf %236, %237 : vector<8x192xf32>
    %239 = vector.extract_strided_slice %232 {offsets = [0, 192], sizes = [8, 64], strides = [1, 1]} : vector<8x256xf32> to vector<8x64xf32>
    %240 = math.tanh %239 : vector<8x64xf32>
    %241 = vector.extract_strided_slice %238 {offsets = [0, 0], sizes = [8, 64], strides = [1, 1]} : vector<8x192xf32> to vector<8x64xf32>
    %242 = vector.extract_strided_slice %238 {offsets = [0, 64], sizes = [8, 64], strides = [1, 1]} : vector<8x192xf32> to vector<8x64xf32>
    %243 = vector.extract_strided_slice %238 {offsets = [0, 128], sizes = [8, 64], strides = [1, 1]} : vector<8x192xf32> to vector<8x64xf32>
    %244 = arith.mulf %241, %227 : vector<8x64xf32>
    %245 = arith.mulf %242, %240 : vector<8x64xf32>
    %246 = arith.addf %244, %245 : vector<8x64xf32>
    %247 = math.tanh %246 : vector<8x64xf32>
    %248 = arith.mulf %243, %247 : vector<8x64xf32>
    %c0_40 = arith.constant 0 : index
    %c0_41 = arith.constant 0 : index
    %249 = vector.load %arg2[%c0_40, %c0_41] : memref<112x32xf32, #tpu.memory_space<vmem>>, vector<64x32xf32>
    %c64 = arith.constant 64 : index
    %c0_42 = arith.constant 0 : index
    %250 = vector.load %arg2[%c64, %c0_42] : memref<112x32xf32, #tpu.memory_space<vmem>>, vector<1x32xf32>
    %c72 = arith.constant 72 : index
    %c0_43 = arith.constant 0 : index
    %251 = vector.load %arg2[%c72, %c0_43] : memref<112x32xf32, #tpu.memory_space<vmem>>, vector<32x32xf32>
    %c104 = arith.constant 104 : index
    %c0_44 = arith.constant 0 : index
    %252 = vector.load %arg2[%c104, %c0_44] : memref<112x32xf32, #tpu.memory_space<vmem>>, vector<1x32xf32>
    %cst_45 = arith.constant dense<0.000000e+00> : vector<8x32xf32>
    %253 = tpu.matmul %248, %249, %cst_45 {dimension_numbers = #tpu.dot_dimension_numbers<[1], [0], [0], [1], [0, 0, 1, 1], [], []>} : vector<8x64xf32>, vector<64x32xf32>, vector<8x32xf32> -> vector<8x32xf32>
    %254 = vector.broadcast %250 : vector<1x32xf32> to vector<8x32xf32>
    %255 = arith.addf %253, %254 : vector<8x32xf32>
    %cst_46 = arith.constant 0.000000e+00 : f32
    %256 = vector.broadcast %cst_46 : f32 to vector<8x32xf32>
    %257 = arith.maximumf %255, %256 : vector<8x32xf32>
    %cst_47 = arith.constant dense<0.000000e+00> : vector<8x32xf32>
    %258 = tpu.matmul %257, %251, %cst_47 {dimension_numbers = #tpu.dot_dimension_numbers<[1], [0], [0], [1], [0, 0, 1, 1], [], []>} : vector<8x32xf32>, vector<32x32xf32>, vector<8x32xf32> -> vector<8x32xf32>
    %259 = vector.broadcast %252 : vector<1x32xf32> to vector<8x32xf32>
    %260 = arith.addf %258, %259 : vector<8x32xf32>
    %261 = vector.extract_strided_slice %260 {offsets = [0, 0], sizes = [8, 4], strides = [1, 1]} : vector<8x32xf32> to vector<8x4xf32>
    %cst_48 = arith.constant dense<0xFF800000> : vector<8xf32>
    %262 = vector.multi_reduction <maximumf>, %261, %cst_48 [1] : vector<8x4xf32> to vector<8xf32>
    %263 = vector.shape_cast %262 : vector<8xf32> to vector<8x1xf32>
    %264 = vector.broadcast %263 : vector<8x1xf32> to vector<8x4xf32>
    %265 = arith.subf %261, %264 : vector<8x4xf32>
    %266 = math.exp %265 : vector<8x4xf32>
    %cst_49 = arith.constant dense<0.000000e+00> : vector<8xf32>
    %267 = vector.multi_reduction <add>, %266, %cst_49 [1] : vector<8x4xf32> to vector<8xf32>
    %268 = vector.shape_cast %267 : vector<8xf32> to vector<8x1xf32>
    %269 = math.log %268 : vector<8x1xf32>
    %270 = vector.broadcast %269 : vector<8x1xf32> to vector<8x4xf32>
    %271 = arith.subf %265, %270 : vector<8x4xf32>
    %c0_50 = arith.constant 0 : index
    %c0_51 = arith.constant 0 : index
    %272 = vector.load %arg3[%c0_50, %c0_51] : memref<8x4xf32, #tpu.memory_space<vmem>>, vector<8x4xf32>
    tpu.vector_store %arg3[%c0_50, %c0_51], %271 {strides = array<i32>} : memref<8x4xf32, #tpu.memory_space<vmem>>, vector<8x4xf32>,
    return
  }
}

</mosaic_0001>

<llo_original>
// kernel: sentiment_forward.1
$region0: #{sentiment_forward.1}
  #allocation0 [shape = 'u32[]', space=smem, size = 0x4, offset = 0x4, fixed_abs, tag = 'smem constant byte address 0x4 - core index']
  #allocation1 [shape = 'u32[144,128]{1,0:T(1,128)}', space=vmem, size = 0x12000, scoped, tag = 'internal scratch']
  #allocation2 [shape = 'f32[64,256]{1,0:T(8,128)}', space=vmem, size = 0x10000, scoped, tag = 'scratch operand']
  %s0 = inlined_call_operand.vmem [shape: s32[8,8], index: 0, kind: input, shape index: {}]
  %s1 = inlined_call_operand.hbm [shape: f32[320,256], index: 1, kind: input, shape index: {}]
  %s2 = inlined_call_operand.vmem [shape: f32[112,32], index: 2, kind: input, shape index: {}]
  %s3 = inlined_call_operand.vmem [shape: f32[8,4], index: 3, kind: output, shape index: {}]
  %s4 = sld [smem:[#allocation0]]
  $region26: #{sentiment_forward.1} parent=0
    _
  %s6 = ssub.s32 1, %s4
  %s7 = scalar_select 0, %s6, %s4
  $region1: #{sentiment_forward.1} parent=0
    #allocation3 [shape = 'u8[327680]{0}', space=vmem, size = 0x50000, scoped, tag = 'input window, operand 1, single buffered']
    #allocation4 [shape = 's32[1]{0}', space=sflag, size = 0x4, scoped, tag = 'scoped memory for sentiment_forward.1']
    %8 = vsyncpa [#allocation4], 0
    // Predicated region
    $region2: #{sentiment_forward.1} parent=1 // pred_check
      _
    $region3: #{sentiment_forward.1} parent=1 // pred_check_branch
      %10 = sbr.rel (0) target = $region5
    $region4: #{sentiment_forward.1} parent=1 // pred_region
      _
    $region5: #{sentiment_forward.1} parent=1 // pred_fallthru
      _
    // Predicated region
    $region6: #{sentiment_forward.1} parent=1 // pred_check
      _
    $region7: #{sentiment_forward.1} parent=1 // pred_check_branch
      %12 = sbr.rel (0) target = $region9
    $region8: #{sentiment_forward.1} parent=1 // pred_region
      %s14 = ssub.s32 10240, 10240
      %15 = vsyncadd [#allocation4], %s14
      %s16 = sshll.u32 [#allocation3], 4
      %s17 = int_to_ptr.vmem [resolvable:$true] %s16
      %22 = dma.hbm_to_vmem [thread:$0]  %s1, 10240, %s17, [#allocation4], 256, 256, 16
    $region9: #{sentiment_forward.1} parent=1 // pred_fallthru
      _
    // Predicated region
    $region10: #{sentiment_forward.1} parent=1 // pred_check
      _
    $region11: #{sentiment_forward.1} parent=1 // pred_check_branch
      %24 = sbr.rel (0) target = $region13
    $region12: #{sentiment_forward.1} parent=1 // pred_region
      _
    $region13: #{sentiment_forward.1} parent=1 // pred_fallthru
      _
    // Predicated region
    $region14: #{sentiment_forward.1} parent=1 // pred_check
      _
    $region15: #{sentiment_forward.1} parent=1 // pred_check_branch
      %26 = sbr.rel (0) target = $region17
    $region16: #{sentiment_forward.1} parent=1 // pred_region
      %27 = dma.done [#allocation4], 10240
    $region17: #{sentiment_forward.1} parent=1 // pred_fallthru
      _
    %v28 = vld [vmem:[%s0] sm:$0xff]
    %v29 = vlaneseq
    %v30 = vand.u32 %v29, 127
    %v31 = vadd.s32 %v30, 128
    %32 = vset.pattern.permute.xlu0 0
    %33 = vperm.xlu0 %32, %v28
    %v34 = vpop.permute.xlu0 %33
    %vm35 = vcmp.eq.s32.totalorder %v30, %v34
    %vm36 = vcmp.eq.s32.totalorder %v31, %v34
    %v37 = vadd.s32 %v28, 128
    %38 = vset.pattern.permute.xlu0 7
    %39 = vperm.xlu0 %38, %v37
    %v40 = vpop.permute.xlu0 %39
    %vm41 = vcmp.eq.s32.totalorder %v30, %v40
    %vm42 = vcmp.eq.s32.totalorder %v31, %v40
    %vm43 = vmor %vm35, %vm41
    %vm44 = vmor %vm36, %vm42
    %v45 = vsel %vm43, 1, 0
    %v46 = vsel %vm44, 1, 0
    %v47 = vcvt.s32.f32 %v45
    %v48 = vcvt.s32.f32 %v46
    %49 = vset.pattern.permute.xlu0 1
    %50 = vperm.xlu0 %49, %v28
    %v51 = vpop.permute.xlu0 %50
    %vm52 = vcmp.eq.s32.totalorder %v30, %v51
    %vm53 = vcmp.eq.s32.totalorder %v31, %v51
    %54 = vset.pattern.permute.xlu0 6
    %55 = vperm.xlu0 %54, %v37
    %v56 = vpop.permute.xlu0 %55
    %vm57 = vcmp.eq.s32.totalorder %v30, %v56
    %vm58 = vcmp.eq.s32.totalorder %v31, %v56
    %vm59 = vmor %vm52, %vm57
    %vm60 = vmor %vm53, %vm58
    %v61 = vsel %vm59, 1, 0
    %v62 = vsel %vm60, 1, 0
    %v63 = vcvt.s32.f32 %v61
    %v64 = vcvt.s32.f32 %v62
    %65 = vset.pattern.permute.xlu0 2
    %66 = vperm.xlu0 %65, %v28
    %v67 = vpop.permute.xlu0 %66
    %vm68 = vcmp.eq.s32.totalorder %v30, %v67
    %vm69 = vcmp.eq.s32.totalorder %v31, %v67
    %70 = vset.pattern.permute.xlu0 5
    %71 = vperm.xlu0 %70, %v37
    %v72 = vpop.permute.xlu0 %71
    %vm73 = vcmp.eq.s32.totalorder %v30, %v72
    %vm74 = vcmp.eq.s32.totalorder %v31, %v72
    %vm75 = vmor %vm68, %vm73
    %vm76 = vmor %vm69, %vm74
    %v77 = vsel %vm75, 1, 0
    %v78 = vsel %vm76, 1, 0
    %v79 = vcvt.s32.f32 %v77
    %v80 = vcvt.s32.f32 %v78
    %81 = vset.pattern.permute.xlu0 3
    %82 = vperm.xlu0 %81, %v28
    %v83 = vpop.permute.xlu0 %82
    %vm84 = vcmp.eq.s32.totalorder %v30, %v83
    %vm85 = vcmp.eq.s32.totalorder %v31, %v83
    %86 = vset.pattern.permute.xlu0 4
    %87 = vperm.xlu0 %86, %v37
    %v88 = vpop.permute.xlu0 %87
    %vm89 = vcmp.eq.s32.totalorder %v30, %v88
    %vm90 = vcmp.eq.s32.totalorder %v31, %v88
    %vm91 = vmor %vm84, %vm89
    %vm92 = vmor %vm85, %vm90
    %v93 = vsel %vm91, 1, 0
    %v94 = vsel %vm92, 1, 0
    %v95 = vcvt.s32.f32 %v93
    %v96 = vcvt.s32.f32 %v94
    %97 = vset.pattern.permute.xlu0 4
    %98 = vperm.xlu0 %97, %v28
    %v99 = vpop.permute.xlu0 %98
    %vm100 = vcmp.eq.s32.totalorder %v30, %v99
    %vm101 = vcmp.eq.s32.totalorder %v31, %v99
    %102 = vset.pattern.permute.xlu0 3
    %103 = vperm.xlu0 %102, %v37
    %v104 = vpop.permute.xlu0 %103
    %vm105 = vcmp.eq.s32.totalorder %v30, %v104
    %vm106 = vcmp.eq.s32.totalorder %v31, %v104
    %vm107 = vmor %vm100, %vm105
    %vm108 = vmor %vm101, %vm106
    %v109 = vsel %vm107, 1, 0
    %v110 = vsel %vm108, 1, 0
    %v111 = vcvt.s32.f32 %v109
    %v112 = vcvt.s32.f32 %v110
    %113 = vset.pattern.permute.xlu0 5
    %114 = vperm.xlu0 %113, %v28
    %v115 = vpop.permute.xlu0 %114
    %vm116 = vcmp.eq.s32.totalorder %v30, %v115
    %vm117 = vcmp.eq.s32.totalorder %v31, %v115
    %118 = vset.pattern.permute.xlu0 2
    %119 = vperm.xlu0 %118, %v37
    %v120 = vpop.permute.xlu0 %119
    %vm121 = vcmp.eq.s32.totalorder %v30, %v120
    %vm122 = vcmp.eq.s32.totalorder %v31, %v120
    %vm123 = vmor %vm116, %vm121
    %vm124 = vmor %vm117, %vm122
    %v125 = vsel %vm123, 1, 0
    %v126 = vsel %vm124, 1, 0
    %v127 = vcvt.s32.f32 %v125
    %v128 = vcvt.s32.f32 %v126
    %129 = vset.pattern.permute.xlu0 6
    %130 = vperm.xlu0 %129, %v28
    %v131 = vpop.permute.xlu0 %130
    %vm132 = vcmp.eq.s32.totalorder %v30, %v131
    %vm133 = vcmp.eq.s32.totalorder %v31, %v131
    %134 = vset.pattern.permute.xlu0 1
    %135 = vperm.xlu0 %134, %v37
    %v136 = vpop.permute.xlu0 %135
    %vm137 = vcmp.eq.s32.totalorder %v30, %v136
    %vm138 = vcmp.eq.s32.totalorder %v31, %v136
    %vm139 = vmor %vm132, %vm137
    %vm140 = vmor %vm133, %vm138
    %v141 = vsel %vm139, 1, 0
    %v142 = vsel %vm140, 1, 0
    %v143 = vcvt.s32.f32 %v141
    %v144 = vcvt.s32.f32 %v142
    %145 = vset.pattern.permute.xlu0 7
    %146 = vperm.xlu0 %145, %v28
    %v147 = vpop.permute.xlu0 %146
    %vm148 = vcmp.eq.s32.totalorder %v30, %v147
    %vm149 = vcmp.eq.s32.totalorder %v31, %v147
    %150 = vset.pattern.permute.xlu0 0
    %151 = vperm.xlu0 %150, %v37
    %v152 = vpop.permute.xlu0 %151
    %vm153 = vcmp.eq.s32.totalorder %v30, %v152
    %vm154 = vcmp.eq.s32.totalorder %v31, %v152
    %vm155 = vmor %vm148, %vm153
    %vm156 = vmor %vm149, %vm154
    %v157 = vsel %vm155, 1, 0
    %v158 = vsel %vm156, 1, 0
    %v159 = vcvt.s32.f32 %v157
    %v160 = vcvt.s32.f32 %v158
    %v161 = vld [vmem:[#allocation3] sm:$0xff]
    %v162 = vld [vmem:[#allocation3 + $0x8] sm:$0xff]
    %v163 = vld [vmem:[#allocation3 + $0x10] sm:$0xff]
    %v164 = vld [vmem:[#allocation3 + $0x18] sm:$0xff]
    %v165 = vld [vmem:[#allocation3 + $0x20] sm:$0xff]
    %v166 = vld [vmem:[#allocation3 + $0x28] sm:$0xff]
    %v167 = vld [vmem:[#allocation3 + $0x30] sm:$0xff]
    %v168 = vld [vmem:[#allocation3 + $0x38] sm:$0xff]
    %v169 = vld [vmem:[#allocation3 + $0x40] sm:$0xff]
    %v170 = vld [vmem:[#allocation3 + $0x48] sm:$0xff]
    %v171 = vld [vmem:[#allocation3 + $0x50] sm:$0xff]
    %v172 = vld [vmem:[#allocation3 + $0x58] sm:$0xff]
    %v173 = vld [vmem:[#allocation3 + $0x60] sm:$0xff]
    %v174 = vld [vmem:[#allocation3 + $0x68] sm:$0xff]
    %v175 = vld [vmem:[#allocation3 + $0x70] sm:$0xff]
    %v176 = vld [vmem:[#allocation3 + $0x78] sm:$0xff]
    %v177 = vld [vmem:[#allocation3 + $0x80] sm:$0xff]
    %v178 = vld [vmem:[#allocation3 + $0x88] sm:$0xff]
    %v179 = vld [vmem:[#allocation3 + $0x90] sm:$0xff]
    %v180 = vld [vmem:[#allocation3 + $0x98] sm:$0xff]
    %v181 = vld [vmem:[#allocation3 + $0xa0] sm:$0xff]
    %v182 = vld [vmem:[#allocation3 + $0xa8] sm:$0xff]
    %v183 = vld [vmem:[#allocation3 + $0xb0] sm:$0xff]
    %v184 = vld [vmem:[#allocation3 + $0xb8] sm:$0xff]
    %v185 = vld [vmem:[#allocation3 + $0xc0] sm:$0xff]
    %v186 = vld [vmem:[#allocation3 + $0xc8] sm:$0xff]
    %v187 = vld [vmem:[#allocation3 + $0xd0] sm:$0xff]
    %v188 = vld [vmem:[#allocation3 + $0xd8] sm:$0xff]
    %v189 = vld [vmem:[#allocation3 + $0xe0] sm:$0xff]
    %v190 = vld [vmem:[#allocation3 + $0xe8] sm:$0xff]
    %v191 = vld [vmem:[#allocation3 + $0xf0] sm:$0xff]
    %v192 = vld [vmem:[#allocation3 + $0xf8] sm:$0xff]
    %v193 = vld [vmem:[#allocation3 + $0x100] sm:$0xff]
    %v194 = vld [vmem:[#allocation3 + $0x108] sm:$0xff]
    %v195 = vld [vmem:[#allocation3 + $0x110] sm:$0xff]
    %v196 = vld [vmem:[#allocation3 + $0x118] sm:$0xff]
    %v197 = vld [vmem:[#allocation3 + $0x120] sm:$0xff]
    %v198 = vld [vmem:[#allocation3 + $0x128] sm:$0xff]
    %v199 = vld [vmem:[#allocation3 + $0x130] sm:$0xff]
    %v200 = vld [vmem:[#allocation3 + $0x138] sm:$0xff]
    %v201 = vld [vmem:[#allocation3 + $0x140] sm:$0xff]
    %v202 = vld [vmem:[#allocation3 + $0x148] sm:$0xff]
    %v203 = vld [vmem:[#allocation3 + $0x150] sm:$0xff]
    %v204 = vld [vmem:[#allocation3 + $0x158] sm:$0xff]
    %v205 = vld [vmem:[#allocation3 + $0x160] sm:$0xff]
    %v206 = vld [vmem:[#allocation3 + $0x168] sm:$0xff]
    %v207 = vld [vmem:[#allocation3 + $0x170] sm:$0xff]
    %v208 = vld [vmem:[#allocation3 + $0x178] sm:$0xff]
    %v209 = vld [vmem:[#allocation3 + $0x180] sm:$0xff]
    %v210 = vld [vmem:[#allocation3 + $0x188] sm:$0xff]
    %v211 = vld [vmem:[#allocation3 + $0x190] sm:$0xff]
    %v212 = vld [vmem:[#allocation3 + $0x198] sm:$0xff]
    %v213 = vld [vmem:[#allocation3 + $0x1a0] sm:$0xff]
    %v214 = vld [vmem:[#allocation3 + $0x1a8] sm:$0xff]
    %v215 = vld [vmem:[#allocation3 + $0x1b0] sm:$0xff]
    %v216 = vld [vmem:[#allocation3 + $0x1b8] sm:$0xff]
    %v217 = vld [vmem:[#allocation3 + $0x1c0] sm:$0xff]
    %v218 = vld [vmem:[#allocation3 + $0x1c8] sm:$0xff]
    %v219 = vld [vmem:[#allocation3 + $0x1d0] sm:$0xff]
    %v220 = vld [vmem:[#allocation3 + $0x1d8] sm:$0xff]
    %v221 = vld [vmem:[#allocation3 + $0x1e0] sm:$0xff]
    %v222 = vld [vmem:[#allocation3 + $0x1e8] sm:$0xff]
    %v223 = vld [vmem:[#allocation3 + $0x1f0] sm:$0xff]
    %v224 = vld [vmem:[#allocation3 + $0x1f8] sm:$0xff]
    %225 = vmatprep.subr.mxu0 %v192
    %226 = vmatpush1.msra.mxu0 %v191
    %227 = vmatprep.subr.mxu0 %v190
    %228 = vmatpush1.msra.mxu0 %v189
    %229 = vmatprep.subr.mxu0 %v188
    %230 = vmatpush1.msra.mxu0 %v187
    %231 = vmatprep.subr.mxu0 %v186
    %232 = vmatpush1.msra.mxu0 %v185
    %233 = vmatprep.subr.mxu0 %v184
    %234 = vmatpush1.msra.mxu0 %v183
    %235 = vmatprep.subr.mxu0 %v182
    %236 = vmatpush1.msra.mxu0 %v181
    %237 = vmatprep.subr.mxu0 %v180
    %238 = vmatpush1.msra.mxu0 %v179
    %239 = vmatprep.subr.mxu0 %v178
    %240 = vmatpush1.msra.mxu0 %v177
    %241 = vmatprep.subr.mxu0 %v176
    %242 = vmatpush1.msra.mxu0 %v175
    %243 = vmatprep.subr.mxu0 %v174
    %244 = vmatpush1.msra.mxu0 %v173
    %245 = vmatprep.subr.mxu0 %v172
    %246 = vmatpush1.msra.mxu0 %v171
    %247 = vmatprep.subr.mxu0 %v170
    %248 = vmatpush1.msra.mxu0 %v169
    %249 = vmatprep.subr.mxu0 %v168
    %250 = vmatpush1.msra.mxu0 %v167
    %251 = vmatprep.subr.mxu0 %v166
    %252 = vmatpush1.msra.mxu0 %v165
    %253 = vmatprep.subr.mxu0 %v164
    %254 = vmatpush1.msra.mxu0 %v163
    %255 = vmatprep.subr.mxu0 %v162
    %256 = vmatpush1.msra.mxu0 %v161
    %257 = vmatprep.subr.mxu0 %v224
    %258 = vmatpush2.msra.mxu0 %v223
    %259 = vmatprep.subr.mxu0 %v222
    %260 = vmatpush2.msra.mxu0 %v221
    %261 = vmatprep.subr.mxu0 %v220
    %262 = vmatpush2.msra.mxu0 %v219
    %263 = vmatprep.subr.mxu0 %v218
    %264 = vmatpush2.msra.mxu0 %v217
    %265 = vmatprep.subr.mxu0 %v216
    %266 = vmatpush2.msra.mxu0 %v215
    %267 = vmatprep.subr.mxu0 %v214
    %268 = vmatpush2.msra.mxu0 %v213
    %269 = vmatprep.subr.mxu0 %v212
    %270 = vmatpush2.msra.mxu0 %v211
    %271 = vmatprep.subr.mxu0 %v210
    %272 = vmatpush2.msra.mxu0 %v209
    %273 = vmatprep.subr.mxu0 %v208
    %274 = vmatpush2.msra.mxu0 %v207
    %275 = vmatprep.subr.mxu0 %v206
    %276 = vmatpush2.msra.mxu0 %v205
    %277 = vmatprep.subr.mxu0 %v204
    %278 = vmatpush2.msra.mxu0 %v203
    %279 = vmatprep.subr.mxu0 %v202
    %280 = vmatpush2.msra.mxu0 %v201
    %281 = vmatprep.subr.mxu0 %v200
    %282 = vmatpush2.msra.mxu0 %v199
    %283 = vmatprep.subr.mxu0 %v198
    %284 = vmatpush2.msra.mxu0 %v197
    %285 = vmatprep.subr.mxu0 %v196
    %286 = vmatpush2.msra.mxu0 %v195
    %287 = vmatprep.subr.mxu0 %v194
    %288 = vmatpush2.msra.mxu0 %v193
    %289 = vmatprep.mubr.f32.mxu0 %v48
    %290 = vmatmul.mubr.f32.gmra.mxu0 %v47
    %v291 = vpop.f32.mrf.mxu0
    %v292 = vadd.f32 0.0, %v291
    %v293 = vpop.f32.mrf.mxu0
    %v294 = vadd.f32 0.0, %v293
    %295 = vmatprep.mubr.f32.mxu0 %v64
    %296 = vmatmul.mubr.f32.gmra.mxu0 %v63
    %v297 = vpop.f32.mrf.mxu0
    %v298 = vadd.f32 0.0, %v297
    %v299 = vpop.f32.mrf.mxu0
    %v300 = vadd.f32 0.0, %v299
    %301 = vmatprep.mubr.f32.mxu0 %v80
    %302 = vmatmul.mubr.f32.gmra.mxu0 %v79
    %v303 = vpop.f32.mrf.mxu0
    %v304 = vadd.f32 0.0, %v303
    %v305 = vpop.f32.mrf.mxu0
    %v306 = vadd.f32 0.0, %v305
    %307 = vmatprep.mubr.f32.mxu0 %v96
    %308 = vmatmul.mubr.f32.gmra.mxu0 %v95
    %v309 = vpop.f32.mrf.mxu0
    %v310 = vadd.f32 0.0, %v309
    %v311 = vpop.f32.mrf.mxu0
    %v312 = vadd.f32 0.0, %v311
    %313 = vmatprep.mubr.f32.mxu0 %v112
    %314 = vmatmul.mubr.f32.gmra.mxu0 %v111
    %v315 = vpop.f32.mrf.mxu0
    %v316 = vadd.f32 0.0, %v315
    %v317 = vpop.f32.mrf.mxu0
    %v318 = vadd.f32 0.0, %v317
    %319 = vmatprep.mubr.f32.mxu0 %v128
    %320 = vmatmul.mubr.f32.gmra.mxu0 %v127
    %v321 = vpop.f32.mrf.mxu0
    %v322 = vadd.f32 0.0, %v321
    %v323 = vpop.f32.mrf.mxu0
    %v324 = vadd.f32 0.0, %v323
    %325 = vmatprep.mubr.f32.mxu0 %v144
    %326 = vmatmul.mubr.f32.gmra.mxu0 %v143
    %v327 = vpop.f32.mrf.mxu0
    %v328 = vadd.f32 0.0, %v327
    %v329 = vpop.f32.mrf.mxu0
    %v330 = vadd.f32 0.0, %v329
    %331 = vmatprep.mubr.f32.mxu0 %v160
    %332 = vmatmul.mubr.f32.gmra.mxu0 %v159
    %v333 = vpop.f32.mrf.mxu0
    %v334 = vadd.f32 0.0, %v333
    %v335 = vpop.f32.mrf.mxu0
    %v336 = vadd.f32 0.0, %v335
    %337 = vdwg.mxu0
    %338 = vst [vmem:[#allocation2] sm:$0xff] %v292
    %339 = vst [vmem:[#allocation2 + $0x8] sm:$0xff] %v294
    %340 = vst [vmem:[#allocation2 + $0x10] sm:$0xff] %v298
    %341 = vst [vmem:[#allocation2 + $0x18] sm:$0xff] %v300
    %342 = vst [vmem:[#allocation2 + $0x20] sm:$0xff] %v304
    %343 = vst [vmem:[#allocation2 + $0x28] sm:$0xff] %v306
    %344 = vst [vmem:[#allocation2 + $0x30] sm:$0xff] %v310
    %345 = vst [vmem:[#allocation2 + $0x38] sm:$0xff] %v312
    %346 = vst [vmem:[#allocation2 + $0x40] sm:$0xff] %v316
    %347 = vst [vmem:[#allocation2 + $0x48] sm:$0xff] %v318
    %348 = vst [vmem:[#allocation2 + $0x50] sm:$0xff] %v322
    %349 = vst [vmem:[#allocation2 + $0x58] sm:$0xff] %v324
    %350 = vst [vmem:[#allocation2 + $0x60] sm:$0xff] %v328
    %351 = vst [vmem:[#allocation2 + $0x68] sm:$0xff] %v330
    %352 = vst [vmem:[#allocation2 + $0x70] sm:$0xff] %v334
    %353 = vst [vmem:[#allocation2 + $0x78] sm:$0xff] %v336
    %v354 = vld [vmem:[#allocation3 + $0x200] sm:$0xff]
    %v355 = vld [vmem:[#allocation3 + $0x208] sm:$0xff]
    %v356 = vld [vmem:[#allocation3 + $0x210] sm:$0xff]
    %v357 = vld [vmem:[#allocation3 + $0x218] sm:$0xff]
    %v358 = vld [vmem:[#allocation3 + $0x220] sm:$0xff]
    %v359 = vld [vmem:[#allocation3 + $0x228] sm:$0xff]
    %v360 = vld [vmem:[#allocation3 + $0x230] sm:$0xff]
    %v361 = vld [vmem:[#allocation3 + $0x238] sm:$0xff]
    %v362 = vld [vmem:[#allocation3 + $0x240] sm:$0xff]
    %v363 = vld [vmem:[#allocation3 + $0x248] sm:$0xff]
    %v364 = vld [vmem:[#allocation3 + $0x250] sm:$0xff]
    %v365 = vld [vmem:[#allocation3 + $0x258] sm:$0xff]
    %v366 = vld [vmem:[#allocation3 + $0x260] sm:$0xff]
    %v367 = vld [vmem:[#allocation3 + $0x268] sm:$0xff]
    %v368 = vld [vmem:[#allocation3 + $0x270] sm:$0xff]
    %v369 = vld [vmem:[#allocation3 + $0x278] sm:$0xff]
    %v370 = vld [vmem:[#allocation2] sm:$0xff]
    %v371 = vld [vmem:[#allocation2 + $0x8] sm:$0xff]
    %vm372 = vcmask 523264
    %v374 = vsel %vm372, 0.0, 0
    %376 = vmatprep.subr.mxu0 0.0
    %377 = vmatpush1.msra.mxu0 0.0
    %378 = vmatprep.subr.mxu0 0.0
    %379 = vmatpush1.msra.mxu0 0.0
    %380 = vmatprep.subr.mxu0 0.0
    %381 = vmatpush1.msra.mxu0 0.0
    %382 = vmatprep.subr.mxu0 0.0
    %383 = vmatpush1.msra.mxu0 0.0
    %384 = vmatprep.subr.mxu0 0.0
    %385 = vmatpush1.msra.mxu0 0.0
    %386 = vmatprep.subr.mxu0 0.0
    %387 = vmatpush1.msra.mxu0 0.0
    %388 = vmatprep.subr.mxu0 0.0
    %389 = vmatpush1.msra.mxu0 0.0
    %390 = vmatprep.subr.mxu0 0.0
    %391 = vmatpush1.msra.mxu0 0.0
    %392 = vmatprep.subr.mxu0 %v369
    %393 = vmatpush1.msra.mxu0 %v368
    %394 = vmatprep.subr.mxu0 %v367
    %395 = vmatpush1.msra.mxu0 %v366
    %396 = vmatprep.subr.mxu0 %v365
    %397 = vmatpush1.msra.mxu0 %v364
    %398 = vmatprep.subr.mxu0 %v363
    %399 = vmatpush1.msra.mxu0 %v362
    %400 = vmatprep.subr.mxu0 %v361
    %401 = vmatpush1.msra.mxu0 %v360
    %402 = vmatprep.subr.mxu0 %v359
    %403 = vmatpush1.msra.mxu0 %v358
    %404 = vmatprep.subr.mxu0 %v357
    %405 = vmatpush1.msra.mxu0 %v356
    %406 = vmatprep.subr.mxu0 %v355
    %407 = vmatpush1.msra.mxu0 %v354
    %408 = vmatprep.subr.mxu0 0.0
    %409 = vmatpush2.msra.mxu0 0.0
    %410 = vmatprep.subr.mxu0 0.0
    %411 = vmatpush2.msra.mxu0 0.0
    %412 = vmatprep.subr.mxu0 0.0
    %413 = vmatpush2.msra.mxu0 0.0
    %414 = vmatprep.subr.mxu0 0.0
    %415 = vmatpush2.msra.mxu0 0.0
    %416 = vmatprep.subr.mxu0 0.0
    %417 = vmatpush2.msra.mxu0 0.0
    %418 = vmatprep.subr.mxu0 0.0
    %419 = vmatpush2.msra.mxu0 0.0
    %420 = vmatprep.subr.mxu0 0.0
    %421 = vmatpush2.msra.mxu0 0.0
    %422 = vmatprep.subr.mxu0 0.0
    %423 = vmatpush2.msra.mxu0 0.0
    %424 = vmatprep.subr.mxu0 0.0
    %425 = vmatpush2.msra.mxu0 0.0
    %426 = vmatprep.subr.mxu0 0.0
    %427 = vmatpush2.msra.mxu0 0.0
    %428 = vmatprep.subr.mxu0 0.0
    %429 = vmatpush2.msra.mxu0 0.0
    %430 = vmatprep.subr.mxu0 0.0
    %431 = vmatpush2.msra.mxu0 0.0
    %432 = vmatprep.subr.mxu0 0.0
    %433 = vmatpush2.msra.mxu0 0.0
    %434 = vmatprep.subr.mxu0 0.0
    %435 = vmatpush2.msra.mxu0 0.0
    %436 = vmatprep.subr.mxu0 0.0
    %437 = vmatpush2.msra.mxu0 0.0
    %438 = vmatprep.subr.mxu0 0.0
    %439 = vmatpush2.msra.mxu0 0.0
    %440 = vmatprep.mubr.f32.mxu0 0.0
    %441 = vmatmul.mubr.f32.gmra.mxu0 %v374
    %v442 = vpop.f32.mrf.mxu0
    %v443 = vadd.f32 0.0, %v442
    %v444 = vpop.f32.mrf.mxu0
    %v445 = vadd.f32 0.0, %v444
    %446 = vdwg.mxu0
    %v447 = vadd.f32 %v370, %v443
    %v448 = vadd.f32 %v371, %v445
    %v449 = vxor.u32 %v447, 2147483648
    %v450 = vxor.u32 %v448, 2147483648
    %v451 = vmul.f32 %v449, 1.442695
    %v452 = vpow.pop %v451
    %v453 = vmul.f32 %v450, 1.442695
    %v454 = vpow.pop %v453
    %v455 = vadd.f32 %v452, 1.0
    %v456 = vadd.f32 %v454, 1.0
    %v457 = vrcp.pop %v455
    %v458 = vmul.f32 1.0, %v457
    %v459 = vrcp.pop %v456
    %v460 = vmul.f32 1.0, %v459
    %v461 = vtanh.pop %v448
    %v462 = vmul.f32 %v458, 0.0
    %v463 = vmul.f32 %v458, %v461
    %465 = vrot.lane.b32.xlu0 %v463, 64
    %v466 = vpop.permute.xlu0 %465
    %v468 = vadd.f32 %v462, %v466
    %v469 = vtanh.pop %v468
    %v470 = vmul.f32 %v460, %v469
    %v471 = vld [vmem:[#allocation2 + $0x10] sm:$0xff]
    %v472 = vld [vmem:[#allocation2 + $0x18] sm:$0xff]
    %v474 = vsel %vm372, %v470, 0
    %476 = vmatprep.subr.mxu0 0.0
    %477 = vmatpush1.msra.mxu0 0.0
    %478 = vmatprep.subr.mxu0 0.0
    %479 = vmatpush1.msra.mxu0 0.0
    %480 = vmatprep.subr.mxu0 0.0
    %481 = vmatpush1.msra.mxu0 0.0
    %482 = vmatprep.subr.mxu0 0.0
    %483 = vmatpush1.msra.mxu0 0.0
    %484 = vmatprep.subr.mxu0 0.0
    %485 = vmatpush1.msra.mxu0 0.0
    %486 = vmatprep.subr.mxu0 0.0
    %487 = vmatpush1.msra.mxu0 0.0
    %488 = vmatprep.subr.mxu0 0.0
    %489 = vmatpush1.msra.mxu0 0.0
    %490 = vmatprep.subr.mxu0 0.0
    %491 = vmatpush1.msra.mxu0 0.0
    %492 = vmatprep.subr.mxu0 %v369
    %493 = vmatpush1.msra.mxu0 %v368
    %494 = vmatprep.subr.mxu0 %v367
    %495 = vmatpush1.msra.mxu0 %v366
    %496 = vmatprep.subr.mxu0 %v365
    %497 = vmatpush1.msra.mxu0 %v364
    %498 = vmatprep.subr.mxu0 %v363
    %499 = vmatpush1.msra.mxu0 %v362
    %500 = vmatprep.subr.mxu0 %v361
    %501 = vmatpush1.msra.mxu0 %v360
    %502 = vmatprep.subr.mxu0 %v359
    %503 = vmatpush1.msra.mxu0 %v358
    %504 = vmatprep.subr.mxu0 %v357
    %505 = vmatpush1.msra.mxu0 %v356
    %506 = vmatprep.subr.mxu0 %v355
    %507 = vmatpush1.msra.mxu0 %v354
    %508 = vmatprep.subr.mxu0 0.0
    %509 = vmatpush2.msra.mxu0 0.0
    %510 = vmatprep.subr.mxu0 0.0
    %511 = vmatpush2.msra.mxu0 0.0
    %512 = vmatprep.subr.mxu0 0.0
    %513 = vmatpush2.msra.mxu0 0.0
    %514 = vmatprep.subr.mxu0 0.0
    %515 = vmatpush2.msra.mxu0 0.0
    %516 = vmatprep.subr.mxu0 0.0
    %517 = vmatpush2.msra.mxu0 0.0
    %518 = vmatprep.subr.mxu0 0.0
    %519 = vmatpush2.msra.mxu0 0.0
    %520 = vmatprep.subr.mxu0 0.0
    %521 = vmatpush2.msra.mxu0 0.0
    %522 = vmatprep.subr.mxu0 0.0
    %523 = vmatpush2.msra.mxu0 0.0
    %524 = vmatprep.subr.mxu0 0.0
    %525 = vmatpush2.msra.mxu0 0.0
    %526 = vmatprep.subr.mxu0 0.0
    %527 = vmatpush2.msra.mxu0 0.0
    %528 = vmatprep.subr.mxu0 0.0
    %529 = vmatpush2.msra.mxu0 0.0
    %530 = vmatprep.subr.mxu0 0.0
    %531 = vmatpush2.msra.mxu0 0.0
    %532 = vmatprep.subr.mxu0 0.0
    %533 = vmatpush2.msra.mxu0 0.0
    %534 = vmatprep.subr.mxu0 0.0
    %535 = vmatpush2.msra.mxu0 0.0
    %536 = vmatprep.subr.mxu0 0.0
    %537 = vmatpush2.msra.mxu0 0.0
    %538 = vmatprep.subr.mxu0 0.0
    %539 = vmatpush2.msra.mxu0 0.0
    %540 = vmatprep.mubr.f32.mxu0 0.0
    %541 = vmatmul.mubr.f32.gmra.mxu0 %v474
    %v542 = vpop.f32.mrf.mxu0
    %v543 = vadd.f32 0.0, %v542
    %v544 = vpop.f32.mrf.mxu0
    %v545 = vadd.f32 0.0, %v544
    %546 = vdwg.mxu0
    %v547 = vadd.f32 %v471, %v543
    %v548 = vadd.f32 %v472, %v545
    %v549 = vxor.u32 %v547, 2147483648
    %v550 = vxor.u32 %v548, 2147483648
    %v551 = vmul.f32 %v549, 1.442695
    %v552 = vpow.pop %v551
    %v553 = vmul.f32 %v550, 1.442695
    %v554 = vpow.pop %v553
    %v555 = vadd.f32 %v552, 1.0
    %v556 = vadd.f32 %v554, 1.0
    %v557 = vrcp.pop %v555
    %v558 = vmul.f32 1.0, %v557
    %v559 = vrcp.pop %v556
    %v560 = vmul.f32 1.0, %v559
    %v561 = vtanh.pop %v548
    %v562 = vmul.f32 %v558, %v468
    %v563 = vmul.f32 %v558, %v561
    %565 = vrot.lane.b32.xlu0 %v563, 64
    %v566 = vpop.permute.xlu0 %565
    %v568 = vadd.f32 %v562, %v566
    %v569 = vtanh.pop %v568
    %v570 = vmul.f32 %v560, %v569
    %v571 = vld [vmem:[#allocation2 + $0x20] sm:$0xff]
    %v572 = vld [vmem:[#allocation2 + $0x28] sm:$0xff]
    %v574 = vsel %vm372, %v570, 0
    %576 = vmatprep.subr.mxu0 0.0
    %577 = vmatpush1.msra.mxu0 0.0
    %578 = vmatprep.subr.mxu0 0.0
    %579 = vmatpush1.msra.mxu0 0.0
    %580 = vmatprep.subr.mxu0 0.0
    %581 = vmatpush1.msra.mxu0 0.0
    %582 = vmatprep.subr.mxu0 0.0
    %583 = vmatpush1.msra.mxu0 0.0
    %584 = vmatprep.subr.mxu0 0.0
    %585 = vmatpush1.msra.mxu0 0.0
    %586 = vmatprep.subr.mxu0 0.0
    %587 = vmatpush1.msra.mxu0 0.0
    %588 = vmatprep.subr.mxu0 0.0
    %589 = vmatpush1.msra.mxu0 0.0
    %590 = vmatprep.subr.mxu0 0.0
    %591 = vmatpush1.msra.mxu0 0.0
    %592 = vmatprep.subr.mxu0 %v369
    %593 = vmatpush1.msra.mxu0 %v368
    %594 = vmatprep.subr.mxu0 %v367
    %595 = vmatpush1.msra.mxu0 %v366
    %596 = vmatprep.subr.mxu0 %v365
    %597 = vmatpush1.msra.mxu0 %v364
    %598 = vmatprep.subr.mxu0 %v363
    %599 = vmatpush1.msra.mxu0 %v362
    %600 = vmatprep.subr.mxu0 %v361
    %601 = vmatpush1.msra.mxu0 %v360
    %602 = vmatprep.subr.mxu0 %v359
    %603 = vmatpush1.msra.mxu0 %v358
    %604 = vmatprep.subr.mxu0 %v357
    %605 = vmatpush1.msra.mxu0 %v356
    %606 = vmatprep.subr.mxu0 %v355
    %607 = vmatpush1.msra.mxu0 %v354
    %608 = vmatprep.subr.mxu0 0.0
    %609 = vmatpush2.msra.mxu0 0.0
    %610 = vmatprep.subr.mxu0 0.0
    %611 = vmatpush2.msra.mxu0 0.0
    %612 = vmatprep.subr.mxu0 0.0
    %613 = vmatpush2.msra.mxu0 0.0
    %614 = vmatprep.subr.mxu0 0.0
    %615 = vmatpush2.msra.mxu0 0.0
    %616 = vmatprep.subr.mxu0 0.0
    %617 = vmatpush2.msra.mxu0 0.0
    %618 = vmatprep.subr.mxu0 0.0
    %619 = vmatpush2.msra.mxu0 0.0
    %620 = vmatprep.subr.mxu0 0.0
    %621 = vmatpush2.msra.mxu0 0.0
    %622 = vmatprep.subr.mxu0 0.0
    %623 = vmatpush2.msra.mxu0 0.0
    %624 = vmatprep.subr.mxu0 0.0
    %625 = vmatpush2.msra.mxu0 0.0
    %626 = vmatprep.subr.mxu0 0.0
    %627 = vmatpush2.msra.mxu0 0.0
    %628 = vmatprep.subr.mxu0 0.0
    %629 = vmatpush2.msra.mxu0 0.0
    %630 = vmatprep.subr.mxu0 0.0
    %631 = vmatpush2.msra.mxu0 0.0
    %632 = vmatprep.subr.mxu0 0.0
    %633 = vmatpush2.msra.mxu0 0.0
    %634 = vmatprep.subr.mxu0 0.0
    %635 = vmatpush2.msra.mxu0 0.0
    %636 = vmatprep.subr.mxu0 0.0
    %637 = vmatpush2.msra.mxu0 0.0
    %638 = vmatprep.subr.mxu0 0.0
    %639 = vmatpush2.msra.mxu0 0.0
    %640 = vmatprep.mubr.f32.mxu0 0.0
    %641 = vmatmul.mubr.f32.gmra.mxu0 %v574
    %v642 = vpop.f32.mrf.mxu0
    %v643 = vadd.f32 0.0, %v642
    %v644 = vpop.f32.mrf.mxu0
    %v645 = vadd.f32 0.0, %v644
    %646 = vdwg.mxu0
    %v647 = vadd.f32 %v571, %v643
    %v648 = vadd.f32 %v572, %v645
    %v649 = vxor.u32 %v647, 2147483648
    %v650 = vxor.u32 %v648, 2147483648
    %v651 = vmul.f32 %v649, 1.442695
    %v652 = vpow.pop %v651
    %v653 = vmul.f32 %v650, 1.442695
    %v654 = vpow.pop %v653
    %v655 = vadd.f32 %v652, 1.0
    %v656 = vadd.f32 %v654, 1.0
    %v657 = vrcp.pop %v655
    %v658 = vmul.f32 1.0, %v657
    %v659 = vrcp.pop %v656
    %v660 = vmul.f32 1.0, %v659
    %v661 = vtanh.pop %v648
    %v662 = vmul.f32 %v658, %v568
    %v663 = vmul.f32 %v658, %v661
    %665 = vrot.lane.b32.xlu0 %v663, 64
    %v666 = vpop.permute.xlu0 %665
    %v668 = vadd.f32 %v662, %v666
    %v669 = vtanh.pop %v668
    %v670 = vmul.f32 %v660, %v669
    %v671 = vld [vmem:[#allocation2 + $0x30] sm:$0xff]
    %v672 = vld [vmem:[#allocation2 + $0x38] sm:$0xff]
    %v674 = vsel %vm372, %v670, 0
    %676 = vmatprep.subr.mxu0 0.0
    %677 = vmatpush1.msra.mxu0 0.0
    %678 = vmatprep.subr.mxu0 0.0
    %679 = vmatpush1.msra.mxu0 0.0
    %680 = vmatprep.subr.mxu0 0.0
    %681 = vmatpush1.msra.mxu0 0.0
    %682 = vmatprep.subr.mxu0 0.0
    %683 = vmatpush1.msra.mxu0 0.0
    %684 = vmatprep.subr.mxu0 0.0
    %685 = vmatpush1.msra.mxu0 0.0
    %686 = vmatprep.subr.mxu0 0.0
    %687 = vmatpush1.msra.mxu0 0.0
    %688 = vmatprep.subr.mxu0 0.0
    %689 = vmatpush1.msra.mxu0 0.0
    %690 = vmatprep.subr.mxu0 0.0
    %691 = vmatpush1.msra.mxu0 0.0
    %692 = vmatprep.subr.mxu0 %v369
    %693 = vmatpush1.msra.mxu0 %v368
    %694 = vmatprep.subr.mxu0 %v367
    %695 = vmatpush1.msra.mxu0 %v366
    %696 = vmatprep.subr.mxu0 %v365
    %697 = vmatpush1.msra.mxu0 %v364
    %698 = vmatprep.subr.mxu0 %v363
    %699 = vmatpush1.msra.mxu0 %v362
    %700 = vmatprep.subr.mxu0 %v361
    %701 = vmatpush1.msra.mxu0 %v360
    %702 = vmatprep.subr.mxu0 %v359
    %703 = vmatpush1.msra.mxu0 %v358
    %704 = vmatprep.subr.mxu0 %v357
    %705 = vmatpush1.msra.mxu0 %v356
    %706 = vmatprep.subr.mxu0 %v355
    %707 = vmatpush1.msra.mxu0 %v354
    %708 = vmatprep.subr.mxu0 0.0
    %709 = vmatpush2.msra.mxu0 0.0
    %710 = vmatprep.subr.mxu0 0.0
    %711 = vmatpush2.msra.mxu0 0.0
    %712 = vmatprep.subr.mxu0 0.0
    %713 = vmatpush2.msra.mxu0 0.0
    %714 = vmatprep.subr.mxu0 0.0
    %715 = vmatpush2.msra.mxu0 0.0
    %716 = vmatprep.subr.mxu0 0.0
    %717 = vmatpush2.msra.mxu0 0.0
    %718 = vmatprep.subr.mxu0 0.0
    %719 = vmatpush2.msra.mxu0 0.0
    %720 = vmatprep.subr.mxu0 0.0
    %721 = vmatpush2.msra.mxu0 0.0
    %722 = vmatprep.subr.mxu0 0.0
    %723 = vmatpush2.msra.mxu0 0.0
    %724 = vmatprep.subr.mxu0 0.0
    %725 = vmatpush2.msra.mxu0 0.0
    %726 = vmatprep.subr.mxu0 0.0
    %727 = vmatpush2.msra.mxu0 0.0
    %728 = vmatprep.subr.mxu0 0.0
    %729 = vmatpush2.msra.mxu0 0.0
    %730 = vmatprep.subr.mxu0 0.0
    %731 = vmatpush2.msra.mxu0 0.0
    %732 = vmatprep.subr.mxu0 0.0
    %733 = vmatpush2.msra.mxu0 0.0
    %734 = vmatprep.subr.mxu0 0.0
    %735 = vmatpush2.msra.mxu0 0.0
    %736 = vmatprep.subr.mxu0 0.0
    %737 = vmatpush2.msra.mxu0 0.0
    %738 = vmatprep.subr.mxu0 0.0
    %739 = vmatpush2.msra.mxu0 0.0
    %740 = vmatprep.mubr.f32.mxu0 0.0
    %741 = vmatmul.mubr.f32.gmra.mxu0 %v674
    %v742 = vpop.f32.mrf.mxu0
    %v743 = vadd.f32 0.0, %v742
    %v744 = vpop.f32.mrf.mxu0
    %v745 = vadd.f32 0.0, %v744
    %746 = vdwg.mxu0
    %v747 = vadd.f32 %v671, %v743
    %v748 = vadd.f32 %v672, %v745
    %v749 = vxor.u32 %v747, 2147483648
    %v750 = vxor.u32 %v748, 2147483648
    %v751 = vmul.f32 %v749, 1.442695
    %v752 = vpow.pop %v751
    %v753 = vmul.f32 %v750, 1.442695
    %v754 = vpow.pop %v753
    %v755 = vadd.f32 %v752, 1.0
    %v756 = vadd.f32 %v754, 1.0
    %v757 = vrcp.pop %v755
    %v758 = vmul.f32 1.0, %v757
    %v759 = vrcp.pop %v756
    %v760 = vmul.f32 1.0, %v759
    %v761 = vtanh.pop %v748
    %v762 = vmul.f32 %v758, %v668
    %v763 = vmul.f32 %v758, %v761
    %765 = vrot.lane.b32.xlu0 %v763, 64
    %v766 = vpop.permute.xlu0 %765
    %v768 = vadd.f32 %v762, %v766
    %v769 = vtanh.pop %v768
    %v770 = vmul.f32 %v760, %v769
    %v771 = vld [vmem:[#allocation2 + $0x40] sm:$0xff]
    %v772 = vld [vmem:[#allocation2 + $0x48] sm:$0xff]
    %v774 = vsel %vm372, %v770, 0
    %776 = vmatprep.subr.mxu0 0.0
    %777 = vmatpush1.msra.mxu0 0.0
    %778 = vmatprep.subr.mxu0 0.0
    %779 = vmatpush1.msra.mxu0 0.0
    %780 = vmatprep.subr.mxu0 0.0
    %781 = vmatpush1.msra.mxu0 0.0
    %782 = vmatprep.subr.mxu0 0.0
    %783 = vmatpush1.msra.mxu0 0.0
    %784 = vmatprep.subr.mxu0 0.0
    %785 = vmatpush1.msra.mxu0 0.0
    %786 = vmatprep.subr.mxu0 0.0
    %787 = vmatpush1.msra.mxu0 0.0
    %788 = vmatprep.subr.mxu0 0.0
    %789 = vmatpush1.msra.mxu0 0.0
    %790 = vmatprep.subr.mxu0 0.0
    %791 = vmatpush1.msra.mxu0 0.0
    %792 = vmatprep.subr.mxu0 %v369
    %793 = vmatpush1.msra.mxu0 %v368
    %794 = vmatprep.subr.mxu0 %v367
    %795 = vmatpush1.msra.mxu0 %v366
    %796 = vmatprep.subr.mxu0 %v365
    %797 = vmatpush1.msra.mxu0 %v364
    %798 = vmatprep.subr.mxu0 %v363
    %799 = vmatpush1.msra.mxu0 %v362
    %800 = vmatprep.subr.mxu0 %v361
    %801 = vmatpush1.msra.mxu0 %v360
    %802 = vmatprep.subr.mxu0 %v359
    %803 = vmatpush1.msra.mxu0 %v358
    %804 = vmatprep.subr.mxu0 %v357
    %805 = vmatpush1.msra.mxu0 %v356
    %806 = vmatprep.subr.mxu0 %v355
    %807 = vmatpush1.msra.mxu0 %v354
    %808 = vmatprep.subr.mxu0 0.0
    %809 = vmatpush2.msra.mxu0 0.0
    %810 = vmatprep.subr.mxu0 0.0
    %811 = vmatpush2.msra.mxu0 0.0
    %812 = vmatprep.subr.mxu0 0.0
    %813 = vmatpush2.msra.mxu0 0.0
    %814 = vmatprep.subr.mxu0 0.0
    %815 = vmatpush2.msra.mxu0 0.0
    %816 = vmatprep.subr.mxu0 0.0
    %817 = vmatpush2.msra.mxu0 0.0
    %818 = vmatprep.subr.mxu0 0.0
    %819 = vmatpush2.msra.mxu0 0.0
    %820 = vmatprep.subr.mxu0 0.0
    %821 = vmatpush2.msra.mxu0 0.0
    %822 = vmatprep.subr.mxu0 0.0
    %823 = vmatpush2.msra.mxu0 0.0
    %824 = vmatprep.subr.mxu0 0.0
    %825 = vmatpush2.msra.mxu0 0.0
    %826 = vmatprep.subr.mxu0 0.0
    %827 = vmatpush2.msra.mxu0 0.0
    %828 = vmatprep.subr.mxu0 0.0
    %829 = vmatpush2.msra.mxu0 0.0
    %830 = vmatprep.subr.mxu0 0.0
    %831 = vmatpush2.msra.mxu0 0.0
    %832 = vmatprep.subr.mxu0 0.0
    %833 = vmatpush2.msra.mxu0 0.0
    %834 = vmatprep.subr.mxu0 0.0
    %835 = vmatpush2.msra.mxu0 0.0
    %836 = vmatprep.subr.mxu0 0.0
    %837 = vmatpush2.msra.mxu0 0.0
    %838 = vmatprep.subr.mxu0 0.0
    %839 = vmatpush2.msra.mxu0 0.0
    %840 = vmatprep.mubr.f32.mxu0 0.0
    %841 = vmatmul.mubr.f32.gmra.mxu0 %v774
    %v842 = vpop.f32.mrf.mxu0
    %v843 = vadd.f32 0.0, %v842
    %v844 = vpop.f32.mrf.mxu0
    %v845 = vadd.f32 0.0, %v844
    %846 = vdwg.mxu0
    %v847 = vadd.f32 %v771, %v843
    %v848 = vadd.f32 %v772, %v845
    %v849 = vxor.u32 %v847, 2147483648
    %v850 = vxor.u32 %v848, 2147483648
    %v851 = vmul.f32 %v849, 1.442695
    %v852 = vpow.pop %v851
    %v853 = vmul.f32 %v850, 1.442695
    %v854 = vpow.pop %v853
    %v855 = vadd.f32 %v852, 1.0
    %v856 = vadd.f32 %v854, 1.0
    %v857 = vrcp.pop %v855
    %v858 = vmul.f32 1.0, %v857
    %v859 = vrcp.pop %v856
    %v860 = vmul.f32 1.0, %v859
    %v861 = vtanh.pop %v848
    %v862 = vmul.f32 %v858, %v768
    %v863 = vmul.f32 %v858, %v861
    %865 = vrot.lane.b32.xlu0 %v863, 64
    %v866 = vpop.permute.xlu0 %865
    %v868 = vadd.f32 %v862, %v866
    %v869 = vtanh.pop %v868
    %v870 = vmul.f32 %v860, %v869
    %v871 = vld [vmem:[#allocation2 + $0x50] sm:$0xff]
    %v872 = vld [vmem:[#allocation2 + $0x58] sm:$0xff]
    %v874 = vsel %vm372, %v870, 0
    %876 = vmatprep.subr.mxu0 0.0
    %877 = vmatpush1.msra.mxu0 0.0
    %878 = vmatprep.subr.mxu0 0.0
    %879 = vmatpush1.msra.mxu0 0.0
    %880 = vmatprep.subr.mxu0 0.0
    %881 = vmatpush1.msra.mxu0 0.0
    %882 = vmatprep.subr.mxu0 0.0
    %883 = vmatpush1.msra.mxu0 0.0
    %884 = vmatprep.subr.mxu0 0.0
    %885 = vmatpush1.msra.mxu0 0.0
    %886 = vmatprep.subr.mxu0 0.0
    %887 = vmatpush1.msra.mxu0 0.0
    %888 = vmatprep.subr.mxu0 0.0
    %889 = vmatpush1.msra.mxu0 0.0
    %890 = vmatprep.subr.mxu0 0.0
    %891 = vmatpush1.msra.mxu0 0.0
    %892 = vmatprep.subr.mxu0 %v369
    %893 = vmatpush1.msra.mxu0 %v368
    %894 = vmatprep.subr.mxu0 %v367
    %895 = vmatpush1.msra.mxu0 %v366
    %896 = vmatprep.subr.mxu0 %v365
    %897 = vmatpush1.msra.mxu0 %v364
    %898 = vmatprep.subr.mxu0 %v363
    %899 = vmatpush1.msra.mxu0 %v362
    %900 = vmatprep.subr.mxu0 %v361
    %901 = vmatpush1.msra.mxu0 %v360
    %902 = vmatprep.subr.mxu0 %v359
    %903 = vmatpush1.msra.mxu0 %v358
    %904 = vmatprep.subr.mxu0 %v357
    %905 = vmatpush1.msra.mxu0 %v356
    %906 = vmatprep.subr.mxu0 %v355
    %907 = vmatpush1.msra.mxu0 %v354
    %908 = vmatprep.subr.mxu0 0.0
    %909 = vmatpush2.msra.mxu0 0.0
    %910 = vmatprep.subr.mxu0 0.0
    %911 = vmatpush2.msra.mxu0 0.0
    %912 = vmatprep.subr.mxu0 0.0
    %913 = vmatpush2.msra.mxu0 0.0
    %914 = vmatprep.subr.mxu0 0.0
    %915 = vmatpush2.msra.mxu0 0.0
    %916 = vmatprep.subr.mxu0 0.0
    %917 = vmatpush2.msra.mxu0 0.0
    %918 = vmatprep.subr.mxu0 0.0
    %919 = vmatpush2.msra.mxu0 0.0
    %920 = vmatprep.subr.mxu0 0.0
    %921 = vmatpush2.msra.mxu0 0.0
    %922 = vmatprep.subr.mxu0 0.0
    %923 = vmatpush2.msra.mxu0 0.0
    %924 = vmatprep.subr.mxu0 0.0
    %925 = vmatpush2.msra.mxu0 0.0
    %926 = vmatprep.subr.mxu0 0.0
    %927 = vmatpush2.msra.mxu0 0.0
    %928 = vmatprep.subr.mxu0 0.0
    %929 = vmatpush2.msra.mxu0 0.0
    %930 = vmatprep.subr.mxu0 0.0
    %931 = vmatpush2.msra.mxu0 0.0
    %932 = vmatprep.subr.mxu0 0.0
    %933 = vmatpush2.msra.mxu0 0.0
    %934 = vmatprep.subr.mxu0 0.0
    %935 = vmatpush2.msra.mxu0 0.0
    %936 = vmatprep.subr.mxu0 0.0
    %937 = vmatpush2.msra.mxu0 0.0
    %938 = vmatprep.subr.mxu0 0.0
    %939 = vmatpush2.msra.mxu0 0.0
    %940 = vmatprep.mubr.f32.mxu0 0.0
    %941 = vmatmul.mubr.f32.gmra.mxu0 %v874
    %v942 = vpop.f32.mrf.mxu0
    %v943 = vadd.f32 0.0, %v942
    %v944 = vpop.f32.mrf.mxu0
    %v945 = vadd.f32 0.0, %v944
    %946 = vdwg.mxu0
    %v947 = vadd.f32 %v871, %v943
    %v948 = vadd.f32 %v872, %v945
    %v949 = vxor.u32 %v947, 2147483648
    %v950 = vxor.u32 %v948, 2147483648
    %v951 = vmul.f32 %v949, 1.442695
    %v952 = vpow.pop %v951
    %v953 = vmul.f32 %v950, 1.442695
    %v954 = vpow.pop %v953
    %v955 = vadd.f32 %v952, 1.0
    %v956 = vadd.f32 %v954, 1.0
    %v957 = vrcp.pop %v955
    %v958 = vmul.f32 1.0, %v957
    %v959 = vrcp.pop %v956
    %v960 = vmul.f32 1.0, %v959
    %v961 = vtanh.pop %v948
    %v962 = vmul.f32 %v958, %v868
    %v963 = vmul.f32 %v958, %v961
    %965 = vrot.lane.b32.xlu0 %v963, 64
    %v966 = vpop.permute.xlu0 %965
    %v968 = vadd.f32 %v962, %v966
    %v969 = vtanh.pop %v968
    %v970 = vmul.f32 %v960, %v969
    %v971 = vld [vmem:[#allocation2 + $0x60] sm:$0xff]
    %v972 = vld [vmem:[#allocation2 + $0x68] sm:$0xff]
    %v974 = vsel %vm372, %v970, 0
    %976 = vmatprep.subr.mxu0 0.0
    %977 = vmatpush1.msra.mxu0 0.0
    %978 = vmatprep.subr.mxu0 0.0
    %979 = vmatpush1.msra.mxu0 0.0
    %980 = vmatprep.subr.mxu0 0.0
    %981 = vmatpush1.msra.mxu0 0.0
    %982 = vmatprep.subr.mxu0 0.0
    %983 = vmatpush1.msra.mxu0 0.0
    %984 = vmatprep.subr.mxu0 0.0
    %985 = vmatpush1.msra.mxu0 0.0
    %986 = vmatprep.subr.mxu0 0.0
    %987 = vmatpush1.msra.mxu0 0.0
    %988 = vmatprep.subr.mxu0 0.0
    %989 = vmatpush1.msra.mxu0 0.0
    %990 = vmatprep.subr.mxu0 0.0
    %991 = vmatpush1.msra.mxu0 0.0
    %992 = vmatprep.subr.mxu0 %v369
    %993 = vmatpush1.msra.mxu0 %v368
    %994 = vmatprep.subr.mxu0 %v367
    %995 = vmatpush1.msra.mxu0 %v366
    %996 = vmatprep.subr.mxu0 %v365
    %997 = vmatpush1.msra.mxu0 %v364
    %998 = vmatprep.subr.mxu0 %v363
    %999 = vmatpush1.msra.mxu0 %v362
    %1000 = vmatprep.subr.mxu0 %v361
    %1001 = vmatpush1.msra.mxu0 %v360
    %1002 = vmatprep.subr.mxu0 %v359
    %1003 = vmatpush1.msra.mxu0 %v358
    %1004 = vmatprep.subr.mxu0 %v357
    %1005 = vmatpush1.msra.mxu0 %v356
    %1006 = vmatprep.subr.mxu0 %v355
    %1007 = vmatpush1.msra.mxu0 %v354
    %1008 = vmatprep.subr.mxu0 0.0
    %1009 = vmatpush2.msra.mxu0 0.0
    %1010 = vmatprep.subr.mxu0 0.0
    %1011 = vmatpush2.msra.mxu0 0.0
    %1012 = vmatprep.subr.mxu0 0.0
    %1013 = vmatpush2.msra.mxu0 0.0
    %1014 = vmatprep.subr.mxu0 0.0
    %1015 = vmatpush2.msra.mxu0 0.0
    %1016 = vmatprep.subr.mxu0 0.0
    %1017 = vmatpush2.msra.mxu0 0.0
    %1018 = vmatprep.subr.mxu0 0.0
    %1019 = vmatpush2.msra.mxu0 0.0
    %1020 = vmatprep.subr.mxu0 0.0
    %1021 = vmatpush2.msra.mxu0 0.0
    %1022 = vmatprep.subr.mxu0 0.0
    %1023 = vmatpush2.msra.mxu0 0.0
    %1024 = vmatprep.subr.mxu0 0.0
    %1025 = vmatpush2.msra.mxu0 0.0
    %1026 = vmatprep.subr.mxu0 0.0
    %1027 = vmatpush2.msra.mxu0 0.0
    %1028 = vmatprep.subr.mxu0 0.0
    %1029 = vmatpush2.msra.mxu0 0.0
    %1030 = vmatprep.subr.mxu0 0.0
    %1031 = vmatpush2.msra.mxu0 0.0
    %1032 = vmatprep.subr.mxu0 0.0
    %1033 = vmatpush2.msra.mxu0 0.0
    %1034 = vmatprep.subr.mxu0 0.0
    %1035 = vmatpush2.msra.mxu0 0.0
    %1036 = vmatprep.subr.mxu0 0.0
    %1037 = vmatpush2.msra.mxu0 0.0
    %1038 = vmatprep.subr.mxu0 0.0
    %1039 = vmatpush2.msra.mxu0 0.0
    %1040 = vmatprep.mubr.f32.mxu0 0.0
    %1041 = vmatmul.mubr.f32.gmra.mxu0 %v974
    %v1042 = vpop.f32.mrf.mxu0
    %v1043 = vadd.f32 0.0, %v1042
    %v1044 = vpop.f32.mrf.mxu0
    %v1045 = vadd.f32 0.0, %v1044
    %1046 = vdwg.mxu0
    %v1047 = vadd.f32 %v971, %v1043
    %v1048 = vadd.f32 %v972, %v1045
    %v1049 = vxor.u32 %v1047, 2147483648
    %v1050 = vxor.u32 %v1048, 2147483648
    %v1051 = vmul.f32 %v1049, 1.442695
    %v1052 = vpow.pop %v1051
    %v1053 = vmul.f32 %v1050, 1.442695
    %v1054 = vpow.pop %v1053
    %v1055 = vadd.f32 %v1052, 1.0
    %v1056 = vadd.f32 %v1054, 1.0
    %v1057 = vrcp.pop %v1055
    %v1058 = vmul.f32 1.0, %v1057
    %v1059 = vrcp.pop %v1056
    %v1060 = vmul.f32 1.0, %v1059
    %v1061 = vtanh.pop %v1048
    %v1062 = vmul.f32 %v1058, %v968
    %v1063 = vmul.f32 %v1058, %v1061
    %1065 = vrot.lane.b32.xlu0 %v1063, 64
    %v1066 = vpop.permute.xlu0 %1065
    %v1068 = vadd.f32 %v1062, %v1066
    %v1069 = vtanh.pop %v1068
    %v1070 = vmul.f32 %v1060, %v1069
    %v1071 = vld [vmem:[#allocation2 + $0x70] sm:$0xff]
    %v1072 = vld [vmem:[#allocation2 + $0x78] sm:$0xff]
    %v1074 = vsel %vm372, %v1070, 0
    %1076 = vmatprep.subr.mxu0 0.0
    %1077 = vmatpush1.msra.mxu0 0.0
    %1078 = vmatprep.subr.mxu0 0.0
    %1079 = vmatpush1.msra.mxu0 0.0
    %1080 = vmatprep.subr.mxu0 0.0
    %1081 = vmatpush1.msra.mxu0 0.0
    %1082 = vmatprep.subr.mxu0 0.0
    %1083 = vmatpush1.msra.mxu0 0.0
    %1084 = vmatprep.subr.mxu0 0.0
    %1085 = vmatpush1.msra.mxu0 0.0
    %1086 = vmatprep.subr.mxu0 0.0
    %1087 = vmatpush1.msra.mxu0 0.0
    %1088 = vmatprep.subr.mxu0 0.0
    %1089 = vmatpush1.msra.mxu0 0.0
    %1090 = vmatprep.subr.mxu0 0.0
    %1091 = vmatpush1.msra.mxu0 0.0
    %1092 = vmatprep.subr.mxu0 %v369
    %1093 = vmatpush1.msra.mxu0 %v368
    %1094 = vmatprep.subr.mxu0 %v367
    %1095 = vmatpush1.msra.mxu0 %v366
    %1096 = vmatprep.subr.mxu0 %v365
    %1097 = vmatpush1.msra.mxu0 %v364
    %1098 = vmatprep.subr.mxu0 %v363
    %1099 = vmatpush1.msra.mxu0 %v362
    %1100 = vmatprep.subr.mxu0 %v361
    %1101 = vmatpush1.msra.mxu0 %v360
    %1102 = vmatprep.subr.mxu0 %v359
    %1103 = vmatpush1.msra.mxu0 %v358
    %1104 = vmatprep.subr.mxu0 %v357
    %1105 = vmatpush1.msra.mxu0 %v356
    %1106 = vmatprep.subr.mxu0 %v355
    %1107 = vmatpush1.msra.mxu0 %v354
    %1108 = vmatprep.subr.mxu0 0.0
    %1109 = vmatpush2.msra.mxu0 0.0
    %1110 = vmatprep.subr.mxu0 0.0
    %1111 = vmatpush2.msra.mxu0 0.0
    %1112 = vmatprep.subr.mxu0 0.0
    %1113 = vmatpush2.msra.mxu0 0.0
    %1114 = vmatprep.subr.mxu0 0.0
    %1115 = vmatpush2.msra.mxu0 0.0
    %1116 = vmatprep.subr.mxu0 0.0
    %1117 = vmatpush2.msra.mxu0 0.0
    %1118 = vmatprep.subr.mxu0 0.0
    %1119 = vmatpush2.msra.mxu0 0.0
    %1120 = vmatprep.subr.mxu0 0.0
    %1121 = vmatpush2.msra.mxu0 0.0
    %1122 = vmatprep.subr.mxu0 0.0
    %1123 = vmatpush2.msra.mxu0 0.0
    %1124 = vmatprep.subr.mxu0 0.0
    %1125 = vmatpush2.msra.mxu0 0.0
    %1126 = vmatprep.subr.mxu0 0.0
    %1127 = vmatpush2.msra.mxu0 0.0
    %1128 = vmatprep.subr.mxu0 0.0
    %1129 = vmatpush2.msra.mxu0 0.0
    %1130 = vmatprep.subr.mxu0 0.0
    %1131 = vmatpush2.msra.mxu0 0.0
    %1132 = vmatprep.subr.mxu0 0.0
    %1133 = vmatpush2.msra.mxu0 0.0
    %1134 = vmatprep.subr.mxu0 0.0
    %1135 = vmatpush2.msra.mxu0 0.0
    %1136 = vmatprep.subr.mxu0 0.0
    %1137 = vmatpush2.msra.mxu0 0.0
    %1138 = vmatprep.subr.mxu0 0.0
    %1139 = vmatpush2.msra.mxu0 0.0
    %1140 = vmatprep.mubr.f32.mxu0 0.0
    %1141 = vmatmul.mubr.f32.gmra.mxu0 %v1074
    %v1142 = vpop.f32.mrf.mxu0
    %v1143 = vadd.f32 0.0, %v1142
    %v1144 = vpop.f32.mrf.mxu0
    %v1145 = vadd.f32 0.0, %v1144
    %1146 = vdwg.mxu0
    %v1147 = vadd.f32 %v1071, %v1143
    %v1148 = vadd.f32 %v1072, %v1145
    %v1149 = vxor.u32 %v1147, 2147483648
    %v1150 = vxor.u32 %v1148, 2147483648
    %v1151 = vmul.f32 %v1149, 1.442695
    %v1152 = vpow.pop %v1151
    %v1153 = vmul.f32 %v1150, 1.442695
    %v1154 = vpow.pop %v1153
    %v1155 = vadd.f32 %v1152, 1.0
    %v1156 = vadd.f32 %v1154, 1.0
    %v1157 = vrcp.pop %v1155
    %v1158 = vmul.f32 1.0, %v1157
    %v1159 = vrcp.pop %v1156
    %v1160 = vmul.f32 1.0, %v1159
    %v1161 = vtanh.pop %v1148
    %v1162 = vmul.f32 %v1158, %v1068
    %v1163 = vmul.f32 %v1158, %v1161
    %1165 = vrot.lane.b32.xlu0 %v1163, 64
    %v1166 = vpop.permute.xlu0 %1165
    %v1168 = vadd.f32 %v1162, %v1166
    %v1169 = vtanh.pop %v1168
    %v1170 = vmul.f32 %v1160, %v1169
    %v1171 = vld [vmem:[%s2] sm:$0xff]
    %v1172 = vld [vmem:[%s2 + $0x8] sm:$0xff]
    %v1173 = vld [vmem:[%s2 + $0x10] sm:$0xff]
    %v1174 = vld [vmem:[%s2 + $0x18] sm:$0xff]
    %v1175 = vld [vmem:[%s2 + $0x20] sm:$0xff]
    %v1176 = vld [vmem:[%s2 + $0x28] sm:$0xff]
    %v1177 = vld [vmem:[%s2 + $0x30] sm:$0xff]
    %v1178 = vld [vmem:[%s2 + $0x38] sm:$0xff]
    %v1179 = vld [vmem:[%s2 + $0x40] sm:$0x1]
    %v1180 = vld [vmem:[%s2 + $0x48] sm:$0xff]
    %v1181 = vld [vmem:[%s2 + $0x50] sm:$0xff]
    %v1182 = vld [vmem:[%s2 + $0x58] sm:$0xff]
    %v1183 = vld [vmem:[%s2 + $0x60] sm:$0xff]
    %v1184 = vld [vmem:[%s2 + $0x68] sm:$0x1]
    %v1185 = vlaneseq
    %v1186 = vshrl.u32 %v1185, 7
    %v1187 = vsub.s32 0, %v1186
    %v1188 = vrot.slane %v1179, %v1187
    %v1190 = vsel %vm372, %v1170, 0
    %1192 = vmatprep.subr.mxu0 0.0
    %1193 = vmatpush1.msra.mxu0 0.0
    %1194 = vmatprep.subr.mxu0 0.0
    %1195 = vmatpush1.msra.mxu0 0.0
    %1196 = vmatprep.subr.mxu0 0.0
    %1197 = vmatpush1.msra.mxu0 0.0
    %1198 = vmatprep.subr.mxu0 0.0
    %1199 = vmatpush1.msra.mxu0 0.0
    %1200 = vmatprep.subr.mxu0 0.0
    %1201 = vmatpush1.msra.mxu0 0.0
    %1202 = vmatprep.subr.mxu0 0.0
    %1203 = vmatpush1.msra.mxu0 0.0
    %1204 = vmatprep.subr.mxu0 0.0
    %1205 = vmatpush1.msra.mxu0 0.0
    %1206 = vmatprep.subr.mxu0 0.0
    %1207 = vmatpush1.msra.mxu0 0.0
    %1208 = vmatprep.subr.mxu0 0.0
    %1209 = vmatpush1.msra.mxu0 %v1178
    %1210 = vmatprep.subr.mxu0 0.0
    %1211 = vmatpush1.msra.mxu0 %v1177
    %1212 = vmatprep.subr.mxu0 0.0
    %1213 = vmatpush1.msra.mxu0 %v1176
    %1214 = vmatprep.subr.mxu0 0.0
    %1215 = vmatpush1.msra.mxu0 %v1175
    %1216 = vmatprep.subr.mxu0 0.0
    %1217 = vmatpush1.msra.mxu0 %v1174
    %1218 = vmatprep.subr.mxu0 0.0
    %1219 = vmatpush1.msra.mxu0 %v1173
    %1220 = vmatprep.subr.mxu0 0.0
    %1221 = vmatpush1.msra.mxu0 %v1172
    %1222 = vmatprep.subr.mxu0 0.0
    %1223 = vmatpush1.msra.mxu0 %v1171
    %1224 = vmatprep.subr.mxu0 0.0
    %1225 = vmatpush2.msra.mxu0 0.0
    %1226 = vmatprep.subr.mxu0 0.0
    %1227 = vmatpush2.msra.mxu0 0.0
    %1228 = vmatprep.subr.mxu0 0.0
    %1229 = vmatpush2.msra.mxu0 0.0
    %1230 = vmatprep.subr.mxu0 0.0
    %1231 = vmatpush2.msra.mxu0 0.0
    %1232 = vmatprep.subr.mxu0 0.0
    %1233 = vmatpush2.msra.mxu0 0.0
    %1234 = vmatprep.subr.mxu0 0.0
    %1235 = vmatpush2.msra.mxu0 0.0
    %1236 = vmatprep.subr.mxu0 0.0
    %1237 = vmatpush2.msra.mxu0 0.0
    %1238 = vmatprep.subr.mxu0 0.0
    %1239 = vmatpush2.msra.mxu0 0.0
    %1240 = vmatprep.subr.mxu0 0.0
    %1241 = vmatpush2.msra.mxu0 0.0
    %1242 = vmatprep.subr.mxu0 0.0
    %1243 = vmatpush2.msra.mxu0 0.0
    %1244 = vmatprep.subr.mxu0 0.0
    %1245 = vmatpush2.msra.mxu0 0.0
    %1246 = vmatprep.subr.mxu0 0.0
    %1247 = vmatpush2.msra.mxu0 0.0
    %1248 = vmatprep.subr.mxu0 0.0
    %1249 = vmatpush2.msra.mxu0 0.0
    %1250 = vmatprep.subr.mxu0 0.0
    %1251 = vmatpush2.msra.mxu0 0.0
    %1252 = vmatprep.subr.mxu0 0.0
    %1253 = vmatpush2.msra.mxu0 0.0
    %1254 = vmatprep.subr.mxu0 0.0
    %1255 = vmatpush2.msra.mxu0 0.0
    %1256 = vmatprep.mubr.f32.mxu0 0.0
    %1257 = vmatmul.mubr.f32.gmra.mxu0 %v1190
    %v1258 = vpop.f32.mrf.mxu0
    %v1259 = vadd.f32 %v1188, %v1258
    %v1260 = vpop.f32.mrf.mxu0
    %1261 = vdwg.mxu0
    %v1262 = vmax.f32 %v1259, 0.0
    %v1263 = vlaneseq
    %v1264 = vshrl.u32 %v1263, 7
    %v1265 = vsub.s32 0, %v1264
    %v1266 = vrot.slane %v1184, %v1265
    %vm1267 = vcmask 261120
    %v1269 = vsel %vm1267, %v1262, 0
    %1271 = vmatprep.subr.mxu0 0.0
    %1272 = vmatpush1.msra.mxu0 0.0
    %1273 = vmatprep.subr.mxu0 0.0
    %1274 = vmatpush1.msra.mxu0 0.0
    %1275 = vmatprep.subr.mxu0 0.0
    %1276 = vmatpush1.msra.mxu0 0.0
    %1277 = vmatprep.subr.mxu0 0.0
    %1278 = vmatpush1.msra.mxu0 0.0
    %1279 = vmatprep.subr.mxu0 0.0
    %1280 = vmatpush1.msra.mxu0 0.0
    %1281 = vmatprep.subr.mxu0 0.0
    %1282 = vmatpush1.msra.mxu0 0.0
    %1283 = vmatprep.subr.mxu0 0.0
    %1284 = vmatpush1.msra.mxu0 0.0
    %1285 = vmatprep.subr.mxu0 0.0
    %1286 = vmatpush1.msra.mxu0 0.0
    %1287 = vmatprep.subr.mxu0 0.0
    %1288 = vmatpush1.msra.mxu0 0.0
    %1289 = vmatprep.subr.mxu0 0.0
    %1290 = vmatpush1.msra.mxu0 0.0
    %1291 = vmatprep.subr.mxu0 0.0
    %1292 = vmatpush1.msra.mxu0 0.0
    %1293 = vmatprep.subr.mxu0 0.0
    %1294 = vmatpush1.msra.mxu0 0.0
    %1295 = vmatprep.subr.mxu0 0.0
    %1296 = vmatpush1.msra.mxu0 %v1183
    %1297 = vmatprep.subr.mxu0 0.0
    %1298 = vmatpush1.msra.mxu0 %v1182
    %1299 = vmatprep.subr.mxu0 0.0
    %1300 = vmatpush1.msra.mxu0 %v1181
    %1301 = vmatprep.subr.mxu0 0.0
    %1302 = vmatpush1.msra.mxu0 %v1180
    %1303 = vmatprep.subr.mxu0 0.0
    %1304 = vmatpush2.msra.mxu0 0.0
    %1305 = vmatprep.subr.mxu0 0.0
    %1306 = vmatpush2.msra.mxu0 0.0
    %1307 = vmatprep.subr.mxu0 0.0
    %1308 = vmatpush2.msra.mxu0 0.0
    %1309 = vmatprep.subr.mxu0 0.0
    %1310 = vmatpush2.msra.mxu0 0.0
    %1311 = vmatprep.subr.mxu0 0.0
    %1312 = vmatpush2.msra.mxu0 0.0
    %1313 = vmatprep.subr.mxu0 0.0
    %1314 = vmatpush2.msra.mxu0 0.0
    %1315 = vmatprep.subr.mxu0 0.0
    %1316 = vmatpush2.msra.mxu0 0.0
    %1317 = vmatprep.subr.mxu0 0.0
    %1318 = vmatpush2.msra.mxu0 0.0
    %1319 = vmatprep.subr.mxu0 0.0
    %1320 = vmatpush2.msra.mxu0 0.0
    %1321 = vmatprep.subr.mxu0 0.0
    %1322 = vmatpush2.msra.mxu0 0.0
    %1323 = vmatprep.subr.mxu0 0.0
    %1324 = vmatpush2.msra.mxu0 0.0
    %1325 = vmatprep.subr.mxu0 0.0
    %1326 = vmatpush2.msra.mxu0 0.0
    %1327 = vmatprep.subr.mxu0 0.0
    %1328 = vmatpush2.msra.mxu0 0.0
    %1329 = vmatprep.subr.mxu0 0.0
    %1330 = vmatpush2.msra.mxu0 0.0
    %1331 = vmatprep.subr.mxu0 0.0
    %1332 = vmatpush2.msra.mxu0 0.0
    %1333 = vmatprep.subr.mxu0 0.0
    %1334 = vmatpush2.msra.mxu0 0.0
    %1335 = vmatprep.mubr.f32.mxu0 0.0
    %1336 = vmatmul.mubr.f32.gmra.mxu0 %v1269
    %v1337 = vpop.f32.mrf.mxu0
    %v1338 = vadd.f32 %v1266, %v1337
    %v1339 = vpop.f32.mrf.mxu0
    %1340 = vdwg.mxu0
    %vm1341 = vcmask 31744
    %v1342 = vsel %vm1341, %v1338, -inf
    %1343 = vmax.xlane.f32.xlu0 %v1342
    %v1344 = vpop.xlane.xlu0 %1343
    %v1345 = vsub.f32 %v1338, %v1344
    %v1346 = vmul.f32 %v1345, 1.442695
    %v1347 = vpow.pop %v1346
    %v1348 = vsel %vm1341, %v1347, 0.0
    %1349 = vadd.xlane.f32.xlu0 %v1348
    %v1350 = vpop.xlane.xlu0 %1349
    %v1351 = vlog2.pop %v1350
    %v1352 = vmul.f32 %v1351, 0.6931472
    %v1353 = vsub.f32 %v1345, %v1352
    %1354 = vst.msk [vmem:[%s3] sm:$0xff] %vm1341, %v1353
    // Predicated region
    $region18: #{sentiment_forward.1} parent=1 // pred_check
      _
    $region19: #{sentiment_forward.1} parent=1 // pred_check_branch
      %1356 = sbr.rel (0) target = $region21
    $region20: #{sentiment_forward.1} parent=1 // pred_region
      _
    $region21: #{sentiment_forward.1} parent=1 // pred_fallthru
      _
    // Predicated region
    $region22: #{sentiment_forward.1} parent=1 // pred_check
      _
    $region23: #{sentiment_forward.1} parent=1 // pred_check_branch
      %1358 = sbr.rel (0) target = $region25
    $region24: #{sentiment_forward.1} parent=1 // pred_region
      _
    $region25: #{sentiment_forward.1} parent=1 // pred_fallthru
      _
    %1359 = vsyncpa [#allocation4], 1

</llo_original>
